<compile_context>
chip_gen: v6e
topology: v6e:2x2x1
jax: 0.10.0
libtpu: 0.0.40
codegen_flags: <defaults>
</compile_context>

<pallas_src>
import jax
import jax.numpy as jnp
from jax import lax
from jax.experimental import pallas as pl
from jax.experimental.pallas import tpu as pltpu


def _round_up(v, m):
    return ((v + m - 1) // m) * m


def _make_sumconv_kernel(K, Wp, m_pad, l_in):
    """Kernel factory closing over the static tap offsets."""
    offsets = [ki * Wp + kj for ki in range(K) for kj in range(K)]

    def kernel(x_ref, w_ref, b_ref, o_ref):
        # x_ref: (1, C_in, l_in)    zero-padded image, spatial flattened (stride Wp)
        # w_ref: (K*K, C_out, C_in) tap-major pre-summed weights
        # b_ref: (C_out, 1)         pre-summed bias column
        # o_ref: (1, C_out, m_pad)  lane-dense output (stride-Wp flat layout)
        x = x_ref[0]                                     # [C_in, l_in]
        acc = jnp.zeros(o_ref.shape[1:], jnp.float32)    # [C_out, m_pad]
        for t, off in enumerate(offsets):
            # Shift tap (ki,kj) to lane 0 via an XLU rotate; wrapped elements
            # land past m_pad (l_in - max_off >= m_pad) so they never leak
            # into the kept prefix.
            xs = x if off == 0 else pltpu.roll(x, l_in - off, 1)
            acc = acc + jnp.dot(w_ref[t], xs[:, :m_pad],
                                preferred_element_type=jnp.float32)
        o_ref[0] = (acc + b_ref[...].astype(jnp.float32)).astype(o_ref.dtype)

    return kernel


def sum_conv2d(x, weights, biases):
    """
    x:       [N, C_in, H, W]         (NCHW, like PyTorch)
    weights: [L, C_out, C_in, K, K]  (stacked PyTorch conv weights, OIHW)
    biases:  [L, C_out]
    returns: [N, C_out, H, W] == sum_l conv2d_l(x)   (stride 1, padding K//2)
    """
    N, C_in, H, W = x.shape
    L, C_out, _, K, _ = weights.shape
    if K % 2 != 1:
        # Even kernel sizes need asymmetric padding to match PyTorch padding=K//2.
        raise NotImplementedError("sum_conv2d only supports odd kernel sizes")
    p = (K - 1) // 2
    Hp, Wp = H + 2 * p, W + 2 * p

    # --- exact algebraic fold of the L-sum ---------------------------------
    w_sum = jnp.sum(weights, axis=0)                        # [C_out, C_in, K, K]
    b_sum = jnp.sum(biases, axis=0)                         # [C_out]
    # Tap-major layout so the kernel can index one (C_out, C_in) matrix per tap.
    w_taps = jnp.transpose(w_sum, (2, 3, 0, 1)).reshape(K * K, C_out, C_in)
    b_col = b_sum.reshape(C_out, 1)

    # --- zero-pad once and flatten spatial dims with stride Wp -------------
    xp = jnp.pad(x, ((0, 0), (0, 0), (p, p), (p, p)))       # [N, C_in, Hp, Wp]
    x_flat = xp.reshape(N, C_in, Hp * Wp)                   # free (contiguous)

    m_out = H * Wp                        # flat output length (2p junk cols per row)
    m_pad = _round_up(m_out, 128)         # lane-dense, unmasked stores
    max_off = (K - 1) * Wp + (K - 1)      # largest tap shift
    l_in = _round_up(max(Hp * Wp, m_pad + max_off), 128)
    x_flat = jnp.pad(x_flat, ((0, 0), (0, 0), (0, l_in - Hp * Wp)))

    # --- VMEM budget: raise the scoped limit only if the default would bind --
    isz = jnp.dtype(x.dtype).itemsize
    vmem_est = (2 * C_in * l_in * isz            # double-buffered input block
                + 2 * C_out * m_pad * isz        # double-buffered output block
                + C_out * m_pad * 4              # f32 accumulator
                + K * K * C_out * C_in * isz + C_out * isz)
    vmem_limit = None
    if vmem_est > 12 * 2**20:                    # v5e default scoped VMEM is 16 MiB
        vmem_limit = int(min(2 * vmem_est, 96 * 2**20))

    kernel = _make_sumconv_kernel(K, Wp, m_pad, l_in)

    out = pl.pallas_call(
        kernel,
        out_shape=jax.ShapeDtypeStruct((N, C_out, m_pad), x.dtype),
        grid_spec=pltpu.PrefetchScalarGridSpec(
            num_scalar_prefetch=0,
            grid=(N,),
            in_specs=[
                # one padded image per grid step, pipelined DMA along N
                pl.BlockSpec((1, C_in, l_in), lambda n: (n, 0, 0)),
                # pre-summed tap-major weights, resident for all steps
                pl.BlockSpec((K * K, C_out, C_in), lambda n: (0, 0, 0)),
                # pre-summed bias column, resident
                pl.BlockSpec((C_out, 1), lambda n: (0, 0)),
            ],
            out_specs=pl.BlockSpec((1, C_out, m_pad), lambda n: (n, 0, 0)),
        ),
        compiler_params=pltpu.CompilerParams(
            dimension_semantics=("parallel",),
            vmem_limit_bytes=vmem_limit),
    )(x_flat, w_taps, b_col)

    # stride-Wp flat layout -> NCHW: reshape is free, slice drops the 2p junk
    # columns per row (output-sized copy; no whole-output transpose anymore).
    out = out[:, :, :m_out].reshape(N, C_out, H, Wp)[:, :, :, :W]
    return out


def _reference(x, weights, biases):
    """Pure-JAX reference: sum of L conv2d (stride 1, 'same' pad) in NCHW."""
    L = weights.shape[0]
    out = None
    for l in range(L):
        y = lax.conv_general_dilated(
            x, weights[l], window_strides=(1, 1), padding="SAME",
            dimension_numbers=("NCHW", "OIHW", "NCHW"))
        y = y + biases[l][None, :, None, None]
        out = y if out is None else out + y
    return out


if __name__ == "__main__":
    # Small deterministic example: x [2, 4, 16, 16], L=3 convs of
    # Conv2d(4 -> 8, kernel=3, padding=1, bias=True).
    N, C_in, H, W = 2, 4, 16, 16
    L, C_out, K = 3, 8, 3

    key = jax.random.PRNGKey(0)
    kx, kw, kb = jax.random.split(key, 3)
    x = jax.random.normal(kx, (N, C_in, H, W), dtype=jnp.float32)
    weights = jax.random.normal(kw, (L, C_out, C_in, K, K), dtype=jnp.float32) * 0.1
    biases = jax.random.normal(kb, (L, C_out), dtype=jnp.float32) * 0.1

    out = jax.block_until_ready(sum_conv2d(x, weights, biases))
    ref = jax.block_until_ready(_reference(x, weights, biases))

    assert out.shape == (N, C_out, H, W), out.shape
    assert jnp.allclose(out, ref, atol=1e-4, rtol=1e-4), float(
        jnp.max(jnp.abs(out - ref)))
    print("KERNEL_OK")
</pallas_src>

<mosaic_0001>
module attributes {stable_mosaic.version = 11 : i64} {
  func.func @kernel(%arg0: i32, %arg1: memref<1x4x512xf32, #tpu.memory_space<vmem>>, %arg2: memref<9x8x4xf32, #tpu.memory_space<vmem>>, %arg3: memref<8x1xf32, #tpu.memory_space<vmem>>, %arg4: memref<1x8x384xf32, #tpu.memory_space<vmem>>) attributes {dimension_semantics = [#tpu.dimension_semantics<parallel>], iteration_bounds = array<i64: 2>, scalar_prefetch = 0 : i64, scratch_operands = 0 : i64, tpu.core_type = #tpu.core_type<tc>, window_params = [{transform_indices = @transform_0, window_bounds = array<i64: 1, 4, 512>}, {pipeline_mode = #tpu.pipeline_mode<synchronous>, transform_indices = @transform_1, window_bounds = array<i64: 9, 8, 4>}, {pipeline_mode = #tpu.pipeline_mode<synchronous>, transform_indices = @transform_2, window_bounds = array<i64: 8, 1>}, {transform_indices = @transform_3, window_bounds = array<i64: 1, 8, 384>}]} {
    %c0 = arith.constant 0 : index
    %c0_0 = arith.constant 0 : index
    %c0_1 = arith.constant 0 : index
    %0 = vector.load %arg1[%c0, %c0_0, %c0_1] : memref<1x4x512xf32, #tpu.memory_space<vmem>>, vector<1x4x512xf32>
    %1 = vector.shape_cast %0 : vector<1x4x512xf32> to vector<4x512xf32>
    %cst = arith.constant 0.000000e+00 : f32
    %2 = vector.broadcast %cst : f32 to vector<8x384xf32>
    %c0_2 = arith.constant 0 : index
    %c0_3 = arith.constant 0 : index
    %c0_4 = arith.constant 0 : index
    %3 = vector.load %arg2[%c0_2, %c0_3, %c0_4] : memref<9x8x4xf32, #tpu.memory_space<vmem>>, vector<1x8x4xf32>
    %4 = vector.shape_cast %3 : vector<1x8x4xf32> to vector<8x4xf32>
    %5 = vector.extract_strided_slice %1 {offsets = [0, 0], sizes = [4, 384], strides = [1, 1]} : vector<4x512xf32> to vector<4x384xf32>
    %cst_5 = arith.constant dense<0.000000e+00> : vector<8x384xf32>
    %6 = tpu.matmul %4, %5, %cst_5 {dimension_numbers = #tpu.dot_dimension_numbers<[1], [0], [0], [1], [0, 0, 1, 1], [], []>} : vector<8x4xf32>, vector<4x384xf32>, vector<8x384xf32> -> vector<8x384xf32>
    %7 = arith.addf %2, %6 : vector<8x384xf32>
    %c511_i32 = arith.constant 511 : i32
    %8 = tpu.dynamic_rotate %1 by %c511_i32 dim 1 : vector<4x512xf32>, i32 -> vector<4x512xf32>
    %c1 = arith.constant 1 : index
    %c0_6 = arith.constant 0 : index
    %c0_7 = arith.constant 0 : index
    %9 = vector.load %arg2[%c1, %c0_6, %c0_7] : memref<9x8x4xf32, #tpu.memory_space<vmem>>, vector<1x8x4xf32>
    %10 = vector.shape_cast %9 : vector<1x8x4xf32> to vector<8x4xf32>
    %11 = vector.extract_strided_slice %8 {offsets = [0, 0], sizes = [4, 384], strides = [1, 1]} : vector<4x512xf32> to vector<4x384xf32>
    %cst_8 = arith.constant dense<0.000000e+00> : vector<8x384xf32>
    %12 = tpu.matmul %10, %11, %cst_8 {dimension_numbers = #tpu.dot_dimension_numbers<[1], [0], [0], [1], [0, 0, 1, 1], [], []>} : vector<8x4xf32>, vector<4x384xf32>, vector<8x384xf32> -> vector<8x384xf32>
    %13 = arith.addf %7, %12 : vector<8x384xf32>
    %c510_i32 = arith.constant 510 : i32
    %14 = tpu.dynamic_rotate %1 by %c510_i32 dim 1 : vector<4x512xf32>, i32 -> vector<4x512xf32>
    %c2 = arith.constant 2 : index
    %c0_9 = arith.constant 0 : index
    %c0_10 = arith.constant 0 : index
    %15 = vector.load %arg2[%c2, %c0_9, %c0_10] : memref<9x8x4xf32, #tpu.memory_space<vmem>>, vector<1x8x4xf32>
    %16 = vector.shape_cast %15 : vector<1x8x4xf32> to vector<8x4xf32>
    %17 = vector.extract_strided_slice %14 {offsets = [0, 0], sizes = [4, 384], strides = [1, 1]} : vector<4x512xf32> to vector<4x384xf32>
    %cst_11 = arith.constant dense<0.000000e+00> : vector<8x384xf32>
    %18 = tpu.matmul %16, %17, %cst_11 {dimension_numbers = #tpu.dot_dimension_numbers<[1], [0], [0], [1], [0, 0, 1, 1], [], []>} : vector<8x4xf32>, vector<4x384xf32>, vector<8x384xf32> -> vector<8x384xf32>
    %19 = arith.addf %13, %18 : vector<8x384xf32>
    %c494_i32 = arith.constant 494 : i32
    %20 = tpu.dynamic_rotate %1 by %c494_i32 dim 1 : vector<4x512xf32>, i32 -> vector<4x512xf32>
    %c3 = arith.constant 3 : index
    %c0_12 = arith.constant 0 : index
    %c0_13 = arith.constant 0 : index
    %21 = vector.load %arg2[%c3, %c0_12, %c0_13] : memref<9x8x4xf32, #tpu.memory_space<vmem>>, vector<1x8x4xf32>
    %22 = vector.shape_cast %21 : vector<1x8x4xf32> to vector<8x4xf32>
    %23 = vector.extract_strided_slice %20 {offsets = [0, 0], sizes = [4, 384], strides = [1, 1]} : vector<4x512xf32> to vector<4x384xf32>
    %cst_14 = arith.constant dense<0.000000e+00> : vector<8x384xf32>
    %24 = tpu.matmul %22, %23, %cst_14 {dimension_numbers = #tpu.dot_dimension_numbers<[1], [0], [0], [1], [0, 0, 1, 1], [], []>} : vector<8x4xf32>, vector<4x384xf32>, vector<8x384xf32> -> vector<8x384xf32>
    %25 = arith.addf %19, %24 : vector<8x384xf32>
    %c493_i32 = arith.constant 493 : i32
    %26 = tpu.dynamic_rotate %1 by %c493_i32 dim 1 : vector<4x512xf32>, i32 -> vector<4x512xf32>
    %c4 = arith.constant 4 : index
    %c0_15 = arith.constant 0 : index
    %c0_16 = arith.constant 0 : index
    %27 = vector.load %arg2[%c4, %c0_15, %c0_16] : memref<9x8x4xf32, #tpu.memory_space<vmem>>, vector<1x8x4xf32>
    %28 = vector.shape_cast %27 : vector<1x8x4xf32> to vector<8x4xf32>
    %29 = vector.extract_strided_slice %26 {offsets = [0, 0], sizes = [4, 384], strides = [1, 1]} : vector<4x512xf32> to vector<4x384xf32>
    %cst_17 = arith.constant dense<0.000000e+00> : vector<8x384xf32>
    %30 = tpu.matmul %28, %29, %cst_17 {dimension_numbers = #tpu.dot_dimension_numbers<[1], [0], [0], [1], [0, 0, 1, 1], [], []>} : vector<8x4xf32>, vector<4x384xf32>, vector<8x384xf32> -> vector<8x384xf32>
    %31 = arith.addf %25, %30 : vector<8x384xf32>
    %c492_i32 = arith.constant 492 : i32
    %32 = tpu.dynamic_rotate %1 by %c492_i32 dim 1 : vector<4x512xf32>, i32 -> vector<4x512xf32>
    %c5 = arith.constant 5 : index
    %c0_18 = arith.constant 0 : index
    %c0_19 = arith.constant 0 : index
    %33 = vector.load %arg2[%c5, %c0_18, %c0_19] : memref<9x8x4xf32, #tpu.memory_space<vmem>>, vector<1x8x4xf32>
    %34 = vector.shape_cast %33 : vector<1x8x4xf32> to vector<8x4xf32>
    %35 = vector.extract_strided_slice %32 {offsets = [0, 0], sizes = [4, 384], strides = [1, 1]} : vector<4x512xf32> to vector<4x384xf32>
    %cst_20 = arith.constant dense<0.000000e+00> : vector<8x384xf32>
    %36 = tpu.matmul %34, %35, %cst_20 {dimension_numbers = #tpu.dot_dimension_numbers<[1], [0], [0], [1], [0, 0, 1, 1], [], []>} : vector<8x4xf32>, vector<4x384xf32>, vector<8x384xf32> -> vector<8x384xf32>
    %37 = arith.addf %31, %36 : vector<8x384xf32>
    %c476_i32 = arith.constant 476 : i32
    %38 = tpu.dynamic_rotate %1 by %c476_i32 dim 1 : vector<4x512xf32>, i32 -> vector<4x512xf32>
    %c6 = arith.constant 6 : index
    %c0_21 = arith.constant 0 : index
    %c0_22 = arith.constant 0 : index
    %39 = vector.load %arg2[%c6, %c0_21, %c0_22] : memref<9x8x4xf32, #tpu.memory_space<vmem>>, vector<1x8x4xf32>
    %40 = vector.shape_cast %39 : vector<1x8x4xf32> to vector<8x4xf32>
    %41 = vector.extract_strided_slice %38 {offsets = [0, 0], sizes = [4, 384], strides = [1, 1]} : vector<4x512xf32> to vector<4x384xf32>
    %cst_23 = arith.constant dense<0.000000e+00> : vector<8x384xf32>
    %42 = tpu.matmul %40, %41, %cst_23 {dimension_numbers = #tpu.dot_dimension_numbers<[1], [0], [0], [1], [0, 0, 1, 1], [], []>} : vector<8x4xf32>, vector<4x384xf32>, vector<8x384xf32> -> vector<8x384xf32>
    %43 = arith.addf %37, %42 : vector<8x384xf32>
    %c475_i32 = arith.constant 475 : i32
    %44 = tpu.dynamic_rotate %1 by %c475_i32 dim 1 : vector<4x512xf32>, i32 -> vector<4x512xf32>
    %c7 = arith.constant 7 : index
    %c0_24 = arith.constant 0 : index
    %c0_25 = arith.constant 0 : index
    %45 = vector.load %arg2[%c7, %c0_24, %c0_25] : memref<9x8x4xf32, #tpu.memory_space<vmem>>, vector<1x8x4xf32>
    %46 = vector.shape_cast %45 : vector<1x8x4xf32> to vector<8x4xf32>
    %47 = vector.extract_strided_slice %44 {offsets = [0, 0], sizes = [4, 384], strides = [1, 1]} : vector<4x512xf32> to vector<4x384xf32>
    %cst_26 = arith.constant dense<0.000000e+00> : vector<8x384xf32>
    %48 = tpu.matmul %46, %47, %cst_26 {dimension_numbers = #tpu.dot_dimension_numbers<[1], [0], [0], [1], [0, 0, 1, 1], [], []>} : vector<8x4xf32>, vector<4x384xf32>, vector<8x384xf32> -> vector<8x384xf32>
    %49 = arith.addf %43, %48 : vector<8x384xf32>
    %c474_i32 = arith.constant 474 : i32
    %50 = tpu.dynamic_rotate %1 by %c474_i32 dim 1 : vector<4x512xf32>, i32 -> vector<4x512xf32>
    %c8 = arith.constant 8 : index
    %c0_27 = arith.constant 0 : index
    %c0_28 = arith.constant 0 : index
    %51 = vector.load %arg2[%c8, %c0_27, %c0_28] : memref<9x8x4xf32, #tpu.memory_space<vmem>>, vector<1x8x4xf32>
    %52 = vector.shape_cast %51 : vector<1x8x4xf32> to vector<8x4xf32>
    %53 = vector.extract_strided_slice %50 {offsets = [0, 0], sizes = [4, 384], strides = [1, 1]} : vector<4x512xf32> to vector<4x384xf32>
    %cst_29 = arith.constant dense<0.000000e+00> : vector<8x384xf32>
    %54 = tpu.matmul %52, %53, %cst_29 {dimension_numbers = #tpu.dot_dimension_numbers<[1], [0], [0], [1], [0, 0, 1, 1], [], []>} : vector<8x4xf32>, vector<4x384xf32>, vector<8x384xf32> -> vector<8x384xf32>
    %55 = arith.addf %49, %54 : vector<8x384xf32>
    %c0_30 = arith.constant 0 : index
    %c0_31 = arith.constant 0 : index
    %56 = vector.load %arg3[%c0_30, %c0_31] : memref<8x1xf32, #tpu.memory_space<vmem>>, vector<8x1xf32>
    %57 = vector.broadcast %56 : vector<8x1xf32> to vector<8x384xf32>
    %58 = arith.addf %55, %57 : vector<8x384xf32>
    %c0_32 = arith.constant 0 : index
    %c0_33 = arith.constant 0 : index
    %c0_34 = arith.constant 0 : index
    %59 = vector.load %arg4[%c0_32, %c0_33, %c0_34] : memref<1x8x384xf32, #tpu.memory_space<vmem>>, vector<1x8x384xf32>
    %60 = vector.shape_cast %59 : vector<1x8x384xf32> to vector<8x384xf32>
    %61 = vector.shape_cast %58 : vector<8x384xf32> to vector<1x8x384xf32>
    tpu.vector_store %arg4[%c0_32, %c0_33, %c0_34], %61 {strides = array<i32>} : memref<1x8x384xf32, #tpu.memory_space<vmem>>, vector<1x8x384xf32>,
    return
  }
  func.func @transform_0(%arg0: i32) -> (i32, i32, i32) {
    %c0_i32 = arith.constant 0 : i32
    %c0_i32_0 = arith.constant 0 : i32
    %c0_i32_1 = arith.constant 0 : i32
    return %arg0, %c0_i32, %c0_i32_0 : i32, i32, i32
  }
  func.func @transform_1(%arg0: i32) -> (i32, i32, i32) {
    %c0_i32 = arith.constant 0 : i32
    %c0_i32_0 = arith.constant 0 : i32
    %c0_i32_1 = arith.constant 0 : i32
    %c0_i32_2 = arith.constant 0 : i32
    return %c0_i32, %c0_i32_0, %c0_i32_1 : i32, i32, i32
  }
  func.func @transform_2(%arg0: i32) -> (i32, i32) {
    %c0_i32 = arith.constant 0 : i32
    %c0_i32_0 = arith.constant 0 : i32
    %c0_i32_1 = arith.constant 0 : i32
    return %c0_i32, %c0_i32_0 : i32, i32
  }
  func.func @transform_3(%arg0: i32) -> (i32, i32, i32) {
    %c0_i32 = arith.constant 0 : i32
    %c0_i32_0 = arith.constant 0 : i32
    %c0_i32_1 = arith.constant 0 : i32
    return %arg0, %c0_i32, %c0_i32_0 : i32, i32, i32
  }
}

</mosaic_0001>

<llo_original>
// kernel: tpu_custom_call.1
$region0: #{tpu_custom_call.1}
  #allocation0 [shape = 'u32[]', space=smem, size = 0x4, offset = 0x4, fixed_abs, tag = 'smem constant byte address 0x4 - core index']
  #allocation1 [shape = 'u32[144,128]{1,0:T(1,128)}', space=vmem, size = 0x12000, scoped, tag = 'internal scratch']
  %s0 = inlined_call_operand.vmem [shape: f32[2,4,512], index: 0, kind: input, shape index: {}]
  %s1 = inlined_call_operand.vmem [shape: f32[9,8,4], index: 1, kind: input, shape index: {}]
  %s2 = inlined_call_operand.vmem [shape: f32[8,1], index: 2, kind: input, shape index: {}]
  %s3 = inlined_call_operand.hbm [shape: f32[2,8,384], index: 3, kind: output, shape index: {}]
  %s4 = sld [smem:[#allocation0]]
  $region45: #{tpu_custom_call.1} parent=0
    _
  %s6 = ssub.s32 1, %s4
  %s7 = scalar_select 0, %s6, %s4
  $region1: #{tpu_custom_call.1} parent=0
    #allocation2 [shape = 'u8[24576]{0}', space=vmem, size = 0x6000, scoped, tag = 'output window, operand 0']
    #allocation3 [shape = 's32[2]{0}', space=sflag, size = 0x8, scoped, tag = 'scoped memory for tpu_custom_call.1']
    %8 = vsyncpa [#allocation3], 0
    %s9 = scalar_lea.sflag [#allocation3], 1
    %10 = vsyncpa %s9, 0
    loop: start=0, step=1, limit=4
    $region2: #{tpu_custom_call.1} parent=1 // loop_pre_header
      _
    $region3: #{tpu_custom_call.1} parent=1 // loop_header
      %s12 = sphi 0, %s16
      %p13 = scmp.ge.s32.totalorder %s12, 4
      %s22 = sphi 0, %s24
      %s25 = sphi 0, %s22
      %s26 = sphi 0, %s25
      %s42 = sphi 0, %s26
      %s46 = sphi 0, %s46
      %s48 = sphi 0, %s46
      %s49 = sphi 0, %s48
      %s63 = sphi 0, %s49
      %s67 = sphi 0, %s67
      %s69 = sphi 0, %s67
      %s70 = sphi 0, %s69
      %s84 = sphi 0, %s70
      %s90 = sphi 0, %s92
      %s93 = sphi 0, %s90
      %s94 = sphi 0, %s93
      %s110 = sphi 0, %s94
    $region4: #{tpu_custom_call.1} parent=1 // loop_header_branch
      %15 = sbr.rel (%p13) target = $region8
    $region5: #{tpu_custom_call.1} parent=1 // loop_body
      %s17 = ssub.s32 %s12, 1
      %s18 = ssub.s32 %s12, 2
      %s19 = sadd.s32 %s12, 1
      %s20 = ssub.s32 %s12, %s19
      %p21 = scmp.eq.s32.totalorder %s20, 0
      %s23 = sadd.s32 %s22, 1
      %s24 = scalar_select %p21, %s22, %s23
      %p27 = pneg %p21
      %p28 = scmp.eq.s32.totalorder %s12, 1
      %p29 = por %p27, %p28
      %p30 = scmp.ne.s32.totalorder %s22, %s25
      %p31 = scmp.eq.s32.totalorder %s12, 0
      %p32 = por %p30, %p31
      %p33 = scmp.ne.s32.totalorder %s22, %s25
      %p34 = scmp.eq.s32.totalorder %s17, 1
      %p35 = por %p33, %p34
      %p36 = scmp.ne.s32.totalorder %s25, %s26
      %p37 = scmp.eq.s32.totalorder %s17, 0
      %p38 = por %p36, %p37
      %p39 = scmp.ne.s32.totalorder %s25, %s26
      %p40 = scmp.eq.s32.totalorder %s18, 1
      %p41 = por %p39, %p40
      %p43 = scmp.ne.s32.totalorder %s26, %s42
      %p44 = scmp.eq.s32.totalorder %s18, 0
      %p45 = por %p43, %p44
      %s47 = sadd.s32 %s46, 1
      %p50 = scmp.eq.s32.totalorder %s12, 1
      %p51 = scmp.ne.s32.totalorder %s46, %s48
      %p52 = scmp.eq.s32.totalorder %s12, 0
      %p53 = por %p51, %p52
      %p54 = scmp.ne.s32.totalorder %s46, %s48
      %p55 = scmp.eq.s32.totalorder %s17, 1
      %p56 = por %p54, %p55
      %p57 = scmp.ne.s32.totalorder %s48, %s49
      %p58 = scmp.eq.s32.totalorder %s17, 0
      %p59 = por %p57, %p58
      %p60 = scmp.ne.s32.totalorder %s48, %s49
      %p61 = scmp.eq.s32.totalorder %s18, 1
      %p62 = por %p60, %p61
      %p64 = scmp.ne.s32.totalorder %s49, %s63
      %p65 = scmp.eq.s32.totalorder %s18, 0
      %p66 = por %p64, %p65
      %s68 = sadd.s32 %s67, 1
      %p71 = scmp.eq.s32.totalorder %s12, 1
      %p72 = scmp.ne.s32.totalorder %s67, %s69
      %p73 = scmp.eq.s32.totalorder %s12, 0
      %p74 = por %p72, %p73
      %p75 = scmp.ne.s32.totalorder %s67, %s69
      %p76 = scmp.eq.s32.totalorder %s17, 1
      %p77 = por %p75, %p76
      %p78 = scmp.ne.s32.totalorder %s69, %s70
      %p79 = scmp.eq.s32.totalorder %s17, 0
      %p80 = por %p78, %p79
      %p81 = scmp.ne.s32.totalorder %s69, %s70
      %p82 = scmp.eq.s32.totalorder %s18, 1
      %p83 = por %p81, %p82
      %p85 = scmp.ne.s32.totalorder %s70, %s84
      %p86 = scmp.eq.s32.totalorder %s18, 0
      %p87 = por %p85, %p86
      %s88 = ssub.s32 %s12, %s19
      %p89 = scmp.eq.s32.totalorder %s88, 0
      %s91 = sadd.s32 %s90, 1
      %s92 = scalar_select %p89, %s90, %s91
      %p95 = pneg %p89
      %p96 = scmp.eq.s32.totalorder %s12, 1
      %p97 = por %p95, %p96
      %p98 = scmp.ne.s32.totalorder %s90, %s93
      %p99 = scmp.eq.s32.totalorder %s12, 0
      %p100 = por %p98, %p99
      %p101 = scmp.ne.s32.totalorder %s90, %s93
      %p102 = scmp.eq.s32.totalorder %s17, 1
      %p103 = por %p101, %p102
      %p104 = scmp.ne.s32.totalorder %s93, %s94
      %p105 = scmp.eq.s32.totalorder %s17, 0
      %p106 = por %p104, %p105
      %p107 = scmp.ne.s32.totalorder %s93, %s94
      %p108 = scmp.eq.s32.totalorder %s18, 1
      %p109 = por %p107, %p108
      %p111 = scmp.ne.s32.totalorder %s94, %s110
      %p112 = scmp.eq.s32.totalorder %s18, 0
      %p113 = por %p111, %p112
      %p114 = scmp.le.s32.totalorder 1, %s12
      %p115 = scmp.lt.s32.totalorder %s12, 3
      %p116 = pnand %p114, %p115
      %p117 = pneg %p116
      // Predicated region
      $region9: #{tpu_custom_call.1} parent=5 // pred_check
        _
      $region10: #{tpu_custom_call.1} parent=5 // pred_check_branch
        %119 = sbr.rel (%p116) target = $region12
      $region11: #{tpu_custom_call.1} parent=5 // pred_region
        %s120 = ssub.s32 %s12, 1
        // Predicated region
        $region13: #{tpu_custom_call.1} parent=11 // pred_check
          %p121 = pneg %p59
        $region14: #{tpu_custom_call.1} parent=11 // pred_check_branch
          %123 = sbr.rel (%p121) target = $region16
        $region15: #{tpu_custom_call.1} parent=11 // pred_region
          _
        $region16: #{tpu_custom_call.1} parent=11 // pred_fallthru
          _
        // Predicated region
        $region17: #{tpu_custom_call.1} parent=11 // pred_check
          %p124 = pneg %p80
        $region18: #{tpu_custom_call.1} parent=11 // pred_check_branch
          %126 = sbr.rel (%p124) target = $region20
        $region19: #{tpu_custom_call.1} parent=11 // pred_region
          _
        $region20: #{tpu_custom_call.1} parent=11 // pred_fallthru
          _
      $region12: #{tpu_custom_call.1} parent=5 // pred_fallthru
        _
      %p127 = scmp.lt.s32.totalorder %s12, 2
      // Predicated region
      $region21: #{tpu_custom_call.1} parent=5 // pred_check
        %p128 = pneg %p127
      $region22: #{tpu_custom_call.1} parent=5 // pred_check_branch
        %130 = sbr.rel (%p128) target = $region24
      $region23: #{tpu_custom_call.1} parent=5 // pred_region
        // Predicated region
        $region25: #{tpu_custom_call.1} parent=23 // pred_check
          %p131 = pneg %p32
        $region26: #{tpu_custom_call.1} parent=23 // pred_check_branch
          %133 = sbr.rel (%p131) target = $region28
        $region27: #{tpu_custom_call.1} parent=23 // pred_region
          %p134 = scmp.lt.s32.totalorder %s12, 1
          %s135 = scalar_select %p134, %s12, 1
          %s136 = smul.addr %s135, 4
          %s137 = smul.addr %s136, 4
          %s138 = scalar_lea.vmem %s0, %s137
        $region28: #{tpu_custom_call.1} parent=23 // pred_fallthru
          _
      $region24: #{tpu_custom_call.1} parent=5 // pred_fallthru
        _
      %p139 = scmp.le.s32.totalorder 1, %s12
      %p140 = scmp.lt.s32.totalorder %s12, 3
      %p141 = pnand %p139, %p140
      %p142 = pneg %p141
      // Predicated region
      $region29: #{tpu_custom_call.1} parent=5 // pred_check
        _
      $region30: #{tpu_custom_call.1} parent=5 // pred_check_branch
        %144 = sbr.rel (%p141) target = $region32
      $region31: #{tpu_custom_call.1} parent=5 // pred_region
        %s145 = ssub.s32 %s12, 1
        %p146 = scmp.lt.s32.totalorder %s17, 1
        %s147 = scalar_select %p146, %s17, 1
        %s148 = smul.addr %s147, 4
        %s149 = smul.addr %s148, 4
        %s150 = scalar_lea.vmem %s0, %s149
        %p151 = pneg %p38
        %p152 = pneg %p35
        %p153 = pneg %p59
        %p154 = pneg %p56
        %p155 = pneg %p80
        %p156 = pneg %p77
        %p157 = pneg %p106
        %p158 = pneg %p103
        %s159 = sand.u32 %s93, 1
        %s160 = scalar_lea.sflag [#allocation3], %s159
        %s161 = sand.u32 %s93, 1
        %s162 = smul.addr %s161, 24
        %s163 = scalar_lea.vmem [#allocation2], %s162
        %p164 = scmp.lt.s32.totalorder %s17, 1
        %s165 = scalar_select %p164, %s17, 1
        %s166 = smul.addr %s165, 4
        %s167 = smul.addr %s166, 4
        %s168 = scalar_lea.vmem %s0, %s167
        %v169 = vld [vmem:[%s168] sm:$0xff]
        %v170 = vld [vmem:[%s168 + $0x8] sm:$0xff]
        %v171 = vld [vmem:[%s1] sm:$0xff]
        %v174 = vcombine.high %v169, %v169
        %v175 = vcombine.high %v170, %v170
        %178 = vrot.lane.b32.xlu0 %v169, 127
        %v179 = vpop.permute.xlu0 %178
        %180 = vrot.lane.b32.xlu0 %v174, 127
        %v181 = vpop.permute.xlu0 %180
        %182 = vrot.lane.b32.xlu0 %v170, 127
        %v183 = vpop.permute.xlu0 %182
        %184 = vrot.lane.b32.xlu0 %v175, 127
        %v185 = vpop.permute.xlu0 %184
        %v186 = vlaneseq
        %v187 = vand.u32 %v186, 127
        %vm188 = vcmp.lt.s32.totalorder %v187, 127
        %v189 = vsel %vm188, %v183, %v185
        %v190 = vsel %vm188, %v181, %v183
        %v191 = vsel %vm188, %v179, %v181
        %s192 = scalar_lea.vmem %s1, 8
        %v193 = vld [vmem:[%s192] sm:$0xff]
        %vm194 = vcmask 31744
        %v196 = vsel %vm194, %v193, 0
        %vm198 = vcmask 1043456
        %v200 = vsel %vm198, %v191, 0
        %v203 = vsel %vm198, %v190, 0
        %v206 = vsel %vm198, %v189, 0
        %208 = vmatprep.subr.mxu0 0.0
        %209 = vmatpush1.msra.mxu0 0.0
        %210 = vmatprep.subr.mxu0 0.0
        %211 = vmatpush1.msra.mxu0 0.0
        %212 = vmatprep.subr.mxu0 0.0
        %213 = vmatpush1.msra.mxu0 0.0
        %214 = vmatprep.subr.mxu0 0.0
        %215 = vmatpush1.msra.mxu0 0.0
        %216 = vmatprep.subr.mxu0 0.0
        %217 = vmatpush1.msra.mxu0 0.0
        %218 = vmatprep.subr.mxu0 0.0
        %219 = vmatpush1.msra.mxu0 0.0
        %220 = vmatprep.subr.mxu0 0.0
        %221 = vmatpush1.msra.mxu0 0.0
        %222 = vmatprep.subr.mxu0 0.0
        %223 = vmatpush1.msra.mxu0 0.0
        %224 = vmatprep.subr.mxu0 0.0
        %225 = vmatpush1.msra.mxu0 0.0
        %226 = vmatprep.subr.mxu0 0.0
        %227 = vmatpush1.msra.mxu0 0.0
        %228 = vmatprep.subr.mxu0 0.0
        %229 = vmatpush1.msra.mxu0 0.0
        %230 = vmatprep.subr.mxu0 0.0
        %231 = vmatpush1.msra.mxu0 0.0
        %232 = vmatprep.subr.mxu0 0.0
        %233 = vmatpush1.msra.mxu0 0.0
        %234 = vmatprep.subr.mxu0 0.0
        %235 = vmatpush1.msra.mxu0 0.0
        %236 = vmatprep.subr.mxu0 0.0
        %237 = vmatpush1.msra.mxu0 0.0
        %238 = vmatprep.subr.mxu0 %v203
        %239 = vmatpush1.msra.mxu0 %v200
        %240 = vmatprep.subr.mxu0 0.0
        %241 = vmatpush2.msra.mxu0 0.0
        %242 = vmatprep.subr.mxu0 0.0
        %243 = vmatpush2.msra.mxu0 0.0
        %244 = vmatprep.subr.mxu0 0.0
        %245 = vmatpush2.msra.mxu0 0.0
        %246 = vmatprep.subr.mxu0 0.0
        %247 = vmatpush2.msra.mxu0 0.0
        %248 = vmatprep.subr.mxu0 0.0
        %249 = vmatpush2.msra.mxu0 0.0
        %250 = vmatprep.subr.mxu0 0.0
        %251 = vmatpush2.msra.mxu0 0.0
        %252 = vmatprep.subr.mxu0 0.0
        %253 = vmatpush2.msra.mxu0 0.0
        %254 = vmatprep.subr.mxu0 0.0
        %255 = vmatpush2.msra.mxu0 0.0
        %256 = vmatprep.subr.mxu0 0.0
        %257 = vmatpush2.msra.mxu0 0.0
        %258 = vmatprep.subr.mxu0 0.0
        %259 = vmatpush2.msra.mxu0 0.0
        %260 = vmatprep.subr.mxu0 0.0
        %261 = vmatpush2.msra.mxu0 0.0
        %262 = vmatprep.subr.mxu0 0.0
        %263 = vmatpush2.msra.mxu0 0.0
        %264 = vmatprep.subr.mxu0 0.0
        %265 = vmatpush2.msra.mxu0 0.0
        %266 = vmatprep.subr.mxu0 0.0
        %267 = vmatpush2.msra.mxu0 0.0
        %268 = vmatprep.subr.mxu0 0.0
        %269 = vmatpush2.msra.mxu0 0.0
        %270 = vmatprep.subr.mxu0 0.0
        %271 = vmatpush2.msra.mxu0 0.0
        %272 = vmatprep.mubr.f32.mxu0 0.0
        %273 = vmatmul.mubr.f32.gmra.mxu0 %v196
        %v274 = vpop.f32.mrf.mxu0
        %v275 = vadd.f32 0.0, %v274
        %v276 = vpop.f32.mrf.mxu0
        %v277 = vadd.f32 0.0, %v276
        %278 = vdwg.mxu0
        %279 = vmatprep.subr.mxu0 0.0
        %280 = vmatpush1.msra.mxu0 0.0
        %281 = vmatprep.subr.mxu0 0.0
        %282 = vmatpush1.msra.mxu0 0.0
        %283 = vmatprep.subr.mxu0 0.0
        %284 = vmatpush1.msra.mxu0 0.0
        %285 = vmatprep.subr.mxu0 0.0
        %286 = vmatpush1.msra.mxu0 0.0
        %287 = vmatprep.subr.mxu0 0.0
        %288 = vmatpush1.msra.mxu0 0.0
        %289 = vmatprep.subr.mxu0 0.0
        %290 = vmatpush1.msra.mxu0 0.0
        %291 = vmatprep.subr.mxu0 0.0
        %292 = vmatpush1.msra.mxu0 0.0
        %293 = vmatprep.subr.mxu0 0.0
        %294 = vmatpush1.msra.mxu0 0.0
        %295 = vmatprep.subr.mxu0 0.0
        %296 = vmatpush1.msra.mxu0 0.0
        %297 = vmatprep.subr.mxu0 0.0
        %298 = vmatpush1.msra.mxu0 0.0
        %299 = vmatprep.subr.mxu0 0.0
        %300 = vmatpush1.msra.mxu0 0.0
        %301 = vmatprep.subr.mxu0 0.0
        %302 = vmatpush1.msra.mxu0 0.0
        %303 = vmatprep.subr.mxu0 0.0
        %304 = vmatpush1.msra.mxu0 0.0
        %305 = vmatprep.subr.mxu0 0.0
        %306 = vmatpush1.msra.mxu0 0.0
        %307 = vmatprep.subr.mxu0 0.0
        %308 = vmatpush1.msra.mxu0 0.0
        %309 = vmatprep.subr.mxu0 0.0
        %310 = vmatpush1.msra.mxu0 %v206
        %311 = vmatprep.subr.mxu0 0.0
        %312 = vmatpush2.msra.mxu0 0.0
        %313 = vmatprep.subr.mxu0 0.0
        %314 = vmatpush2.msra.mxu0 0.0
        %315 = vmatprep.subr.mxu0 0.0
        %316 = vmatpush2.msra.mxu0 0.0
        %317 = vmatprep.subr.mxu0 0.0
        %318 = vmatpush2.msra.mxu0 0.0
        %319 = vmatprep.subr.mxu0 0.0
        %320 = vmatpush2.msra.mxu0 0.0
        %321 = vmatprep.subr.mxu0 0.0
        %322 = vmatpush2.msra.mxu0 0.0
        %323 = vmatprep.subr.mxu0 0.0
        %324 = vmatpush2.msra.mxu0 0.0
        %325 = vmatprep.subr.mxu0 0.0
        %326 = vmatpush2.msra.mxu0 0.0
        %327 = vmatprep.subr.mxu0 0.0
        %328 = vmatpush2.msra.mxu0 0.0
        %329 = vmatprep.subr.mxu0 0.0
        %330 = vmatpush2.msra.mxu0 0.0
        %331 = vmatprep.subr.mxu0 0.0
        %332 = vmatpush2.msra.mxu0 0.0
        %333 = vmatprep.subr.mxu0 0.0
        %334 = vmatpush2.msra.mxu0 0.0
        %335 = vmatprep.subr.mxu0 0.0
        %336 = vmatpush2.msra.mxu0 0.0
        %337 = vmatprep.subr.mxu0 0.0
        %338 = vmatpush2.msra.mxu0 0.0
        %339 = vmatprep.subr.mxu0 0.0
        %340 = vmatpush2.msra.mxu0 0.0
        %341 = vmatprep.subr.mxu0 0.0
        %342 = vmatpush2.msra.mxu0 0.0
        %343 = vmatprep.mubr.f32.mxu0 0.0
        %344 = vmatmul.mubr.f32.gmra.mxu0 %v196
        %v345 = vpop.f32.mrf.mxu0
        %v346 = vadd.f32 0.0, %v345
        %v347 = vpop.f32.mrf.mxu0
        %348 = vdwg.mxu0
        %v350 = vsel %vm194, %v171, 0
        %v352 = vsel %vm198, %v169, 0
        %v354 = vsel %vm198, %v174, 0
        %v356 = vsel %vm198, %v170, 0
        %358 = vmatprep.subr.mxu0 0.0
        %359 = vmatpush1.msra.mxu0 0.0
        %360 = vmatprep.subr.mxu0 0.0
        %361 = vmatpush1.msra.mxu0 0.0
        %362 = vmatprep.subr.mxu0 0.0
        %363 = vmatpush1.msra.mxu0 0.0
        %364 = vmatprep.subr.mxu0 0.0
        %365 = vmatpush1.msra.mxu0 0.0
        %366 = vmatprep.subr.mxu0 0.0
        %367 = vmatpush1.msra.mxu0 0.0
        %368 = vmatprep.subr.mxu0 0.0
        %369 = vmatpush1.msra.mxu0 0.0
        %370 = vmatprep.subr.mxu0 0.0
        %371 = vmatpush1.msra.mxu0 0.0
        %372 = vmatprep.subr.mxu0 0.0
        %373 = vmatpush1.msra.mxu0 0.0
        %374 = vmatprep.subr.mxu0 0.0
        %375 = vmatpush1.msra.mxu0 0.0
        %376 = vmatprep.subr.mxu0 0.0
        %377 = vmatpush1.msra.mxu0 0.0
        %378 = vmatprep.subr.mxu0 0.0
        %379 = vmatpush1.msra.mxu0 0.0
        %380 = vmatprep.subr.mxu0 0.0
        %381 = vmatpush1.msra.mxu0 0.0
        %382 = vmatprep.subr.mxu0 0.0
        %383 = vmatpush1.msra.mxu0 0.0
        %384 = vmatprep.subr.mxu0 0.0
        %385 = vmatpush1.msra.mxu0 0.0
        %386 = vmatprep.subr.mxu0 0.0
        %387 = vmatpush1.msra.mxu0 0.0
        %388 = vmatprep.subr.mxu0 %v354
        %389 = vmatpush1.msra.mxu0 %v352
        %390 = vmatprep.subr.mxu0 0.0
        %391 = vmatpush2.msra.mxu0 0.0
        %392 = vmatprep.subr.mxu0 0.0
        %393 = vmatpush2.msra.mxu0 0.0
        %394 = vmatprep.subr.mxu0 0.0
        %395 = vmatpush2.msra.mxu0 0.0
        %396 = vmatprep.subr.mxu0 0.0
        %397 = vmatpush2.msra.mxu0 0.0
        %398 = vmatprep.subr.mxu0 0.0
        %399 = vmatpush2.msra.mxu0 0.0
        %400 = vmatprep.subr.mxu0 0.0
        %401 = vmatpush2.msra.mxu0 0.0
        %402 = vmatprep.subr.mxu0 0.0
        %403 = vmatpush2.msra.mxu0 0.0
        %404 = vmatprep.subr.mxu0 0.0
        %405 = vmatpush2.msra.mxu0 0.0
        %406 = vmatprep.subr.mxu0 0.0
        %407 = vmatpush2.msra.mxu0 0.0
        %408 = vmatprep.subr.mxu0 0.0
        %409 = vmatpush2.msra.mxu0 0.0
        %410 = vmatprep.subr.mxu0 0.0
        %411 = vmatpush2.msra.mxu0 0.0
        %412 = vmatprep.subr.mxu0 0.0
        %413 = vmatpush2.msra.mxu0 0.0
        %414 = vmatprep.subr.mxu0 0.0
        %415 = vmatpush2.msra.mxu0 0.0
        %416 = vmatprep.subr.mxu0 0.0
        %417 = vmatpush2.msra.mxu0 0.0
        %418 = vmatprep.subr.mxu0 0.0
        %419 = vmatpush2.msra.mxu0 0.0
        %420 = vmatprep.subr.mxu0 0.0
        %421 = vmatpush2.msra.mxu0 0.0
        %422 = vmatprep.mubr.f32.mxu0 0.0
        %423 = vmatmul.mubr.f32.gmra.mxu0 %v350
        %v424 = vpop.f32.mrf.mxu0
        %v425 = vadd.f32 %v275, %v424
        %v426 = vpop.f32.mrf.mxu0
        %v427 = vadd.f32 %v277, %v426
        %428 = vdwg.mxu0
        %429 = vmatprep.subr.mxu0 0.0
        %430 = vmatpush1.msra.mxu0 0.0
        %431 = vmatprep.subr.mxu0 0.0
        %432 = vmatpush1.msra.mxu0 0.0
        %433 = vmatprep.subr.mxu0 0.0
        %434 = vmatpush1.msra.mxu0 0.0
        %435 = vmatprep.subr.mxu0 0.0
        %436 = vmatpush1.msra.mxu0 0.0
        %437 = vmatprep.subr.mxu0 0.0
        %438 = vmatpush1.msra.mxu0 0.0
        %439 = vmatprep.subr.mxu0 0.0
        %440 = vmatpush1.msra.mxu0 0.0
        %441 = vmatprep.subr.mxu0 0.0
        %442 = vmatpush1.msra.mxu0 0.0
        %443 = vmatprep.subr.mxu0 0.0
        %444 = vmatpush1.msra.mxu0 0.0
        %445 = vmatprep.subr.mxu0 0.0
        %446 = vmatpush1.msra.mxu0 0.0
        %447 = vmatprep.subr.mxu0 0.0
        %448 = vmatpush1.msra.mxu0 0.0
        %449 = vmatprep.subr.mxu0 0.0
        %450 = vmatpush1.msra.mxu0 0.0
        %451 = vmatprep.subr.mxu0 0.0
        %452 = vmatpush1.msra.mxu0 0.0
        %453 = vmatprep.subr.mxu0 0.0
        %454 = vmatpush1.msra.mxu0 0.0
        %455 = vmatprep.subr.mxu0 0.0
        %456 = vmatpush1.msra.mxu0 0.0
        %457 = vmatprep.subr.mxu0 0.0
        %458 = vmatpush1.msra.mxu0 0.0
        %459 = vmatprep.subr.mxu0 0.0
        %460 = vmatpush1.msra.mxu0 %v356
        %461 = vmatprep.subr.mxu0 0.0
        %462 = vmatpush2.msra.mxu0 0.0
        %463 = vmatprep.subr.mxu0 0.0
        %464 = vmatpush2.msra.mxu0 0.0
        %465 = vmatprep.subr.mxu0 0.0
        %466 = vmatpush2.msra.mxu0 0.0
        %467 = vmatprep.subr.mxu0 0.0
        %468 = vmatpush2.msra.mxu0 0.0
        %469 = vmatprep.subr.mxu0 0.0
        %470 = vmatpush2.msra.mxu0 0.0
        %471 = vmatprep.subr.mxu0 0.0
        %472 = vmatpush2.msra.mxu0 0.0
        %473 = vmatprep.subr.mxu0 0.0
        %474 = vmatpush2.msra.mxu0 0.0
        %475 = vmatprep.subr.mxu0 0.0
        %476 = vmatpush2.msra.mxu0 0.0
        %477 = vmatprep.subr.mxu0 0.0
        %478 = vmatpush2.msra.mxu0 0.0
        %479 = vmatprep.subr.mxu0 0.0
        %480 = vmatpush2.msra.mxu0 0.0
        %481 = vmatprep.subr.mxu0 0.0
        %482 = vmatpush2.msra.mxu0 0.0
        %483 = vmatprep.subr.mxu0 0.0
        %484 = vmatpush2.msra.mxu0 0.0
        %485 = vmatprep.subr.mxu0 0.0
        %486 = vmatpush2.msra.mxu0 0.0
        %487 = vmatprep.subr.mxu0 0.0
        %488 = vmatpush2.msra.mxu0 0.0
        %489 = vmatprep.subr.mxu0 0.0
        %490 = vmatpush2.msra.mxu0 0.0
        %491 = vmatprep.subr.mxu0 0.0
        %492 = vmatpush2.msra.mxu0 0.0
        %493 = vmatprep.mubr.f32.mxu0 0.0
        %494 = vmatmul.mubr.f32.gmra.mxu0 %v350
        %v495 = vpop.f32.mrf.mxu0
        %v496 = vadd.f32 %v346, %v495
        %v497 = vpop.f32.mrf.mxu0
        %498 = vdwg.mxu0
        %499 = vrot.lane.b32.xlu0 %v169, 126
        %v500 = vpop.permute.xlu0 %499
        %501 = vrot.lane.b32.xlu0 %v174, 126
        %v502 = vpop.permute.xlu0 %501
        %503 = vrot.lane.b32.xlu0 %v170, 126
        %v504 = vpop.permute.xlu0 %503
        %505 = vrot.lane.b32.xlu0 %v175, 126
        %v506 = vpop.permute.xlu0 %505
        %vm507 = vcmp.lt.s32.totalorder %v187, 126
        %v508 = vsel %vm507, %v504, %v506
        %v509 = vsel %vm507, %v502, %v504
        %v510 = vsel %vm507, %v500, %v502
        %s511 = scalar_lea.vmem %s1, 16
        %v512 = vld [vmem:[%s511] sm:$0xff]
        %v514 = vsel %vm194, %v512, 0
        %v517 = vsel %vm198, %v510, 0
        %v520 = vsel %vm198, %v509, 0
        %v523 = vsel %vm198, %v508, 0
        %525 = vmatprep.subr.mxu0 0.0
        %526 = vmatpush1.msra.mxu0 0.0
        %527 = vmatprep.subr.mxu0 0.0
        %528 = vmatpush1.msra.mxu0 0.0
        %529 = vmatprep.subr.mxu0 0.0
        %530 = vmatpush1.msra.mxu0 0.0
        %531 = vmatprep.subr.mxu0 0.0
        %532 = vmatpush1.msra.mxu0 0.0
        %533 = vmatprep.subr.mxu0 0.0
        %534 = vmatpush1.msra.mxu0 0.0
        %535 = vmatprep.subr.mxu0 0.0
        %536 = vmatpush1.msra.mxu0 0.0
        %537 = vmatprep.subr.mxu0 0.0
        %538 = vmatpush1.msra.mxu0 0.0
        %539 = vmatprep.subr.mxu0 0.0
        %540 = vmatpush1.msra.mxu0 0.0
        %541 = vmatprep.subr.mxu0 0.0
        %542 = vmatpush1.msra.mxu0 0.0
        %543 = vmatprep.subr.mxu0 0.0
        %544 = vmatpush1.msra.mxu0 0.0
        %545 = vmatprep.subr.mxu0 0.0
        %546 = vmatpush1.msra.mxu0 0.0
        %547 = vmatprep.subr.mxu0 0.0
        %548 = vmatpush1.msra.mxu0 0.0
        %549 = vmatprep.subr.mxu0 0.0
        %550 = vmatpush1.msra.mxu0 0.0
        %551 = vmatprep.subr.mxu0 0.0
        %552 = vmatpush1.msra.mxu0 0.0
        %553 = vmatprep.subr.mxu0 0.0
        %554 = vmatpush1.msra.mxu0 0.0
        %555 = vmatprep.subr.mxu0 %v520
        %556 = vmatpush1.msra.mxu0 %v517
        %557 = vmatprep.subr.mxu0 0.0
        %558 = vmatpush2.msra.mxu0 0.0
        %559 = vmatprep.subr.mxu0 0.0
        %560 = vmatpush2.msra.mxu0 0.0
        %561 = vmatprep.subr.mxu0 0.0
        %562 = vmatpush2.msra.mxu0 0.0
        %563 = vmatprep.subr.mxu0 0.0
        %564 = vmatpush2.msra.mxu0 0.0
        %565 = vmatprep.subr.mxu0 0.0
        %566 = vmatpush2.msra.mxu0 0.0
        %567 = vmatprep.subr.mxu0 0.0
        %568 = vmatpush2.msra.mxu0 0.0
        %569 = vmatprep.subr.mxu0 0.0
        %570 = vmatpush2.msra.mxu0 0.0
        %571 = vmatprep.subr.mxu0 0.0
        %572 = vmatpush2.msra.mxu0 0.0
        %573 = vmatprep.subr.mxu0 0.0
        %574 = vmatpush2.msra.mxu0 0.0
        %575 = vmatprep.subr.mxu0 0.0
        %576 = vmatpush2.msra.mxu0 0.0
        %577 = vmatprep.subr.mxu0 0.0
        %578 = vmatpush2.msra.mxu0 0.0
        %579 = vmatprep.subr.mxu0 0.0
        %580 = vmatpush2.msra.mxu0 0.0
        %581 = vmatprep.subr.mxu0 0.0
        %582 = vmatpush2.msra.mxu0 0.0
        %583 = vmatprep.subr.mxu0 0.0
        %584 = vmatpush2.msra.mxu0 0.0
        %585 = vmatprep.subr.mxu0 0.0
        %586 = vmatpush2.msra.mxu0 0.0
        %587 = vmatprep.subr.mxu0 0.0
        %588 = vmatpush2.msra.mxu0 0.0
        %589 = vmatprep.mubr.f32.mxu0 0.0
        %590 = vmatmul.mubr.f32.gmra.mxu0 %v514
        %v591 = vpop.f32.mrf.mxu0
        %v592 = vadd.f32 0.0, %v591
        %v593 = vpop.f32.mrf.mxu0
        %v594 = vadd.f32 0.0, %v593
        %595 = vdwg.mxu0
        %596 = vmatprep.subr.mxu0 0.0
        %597 = vmatpush1.msra.mxu0 0.0
        %598 = vmatprep.subr.mxu0 0.0
        %599 = vmatpush1.msra.mxu0 0.0
        %600 = vmatprep.subr.mxu0 0.0
        %601 = vmatpush1.msra.mxu0 0.0
        %602 = vmatprep.subr.mxu0 0.0
        %603 = vmatpush1.msra.mxu0 0.0
        %604 = vmatprep.subr.mxu0 0.0
        %605 = vmatpush1.msra.mxu0 0.0
        %606 = vmatprep.subr.mxu0 0.0
        %607 = vmatpush1.msra.mxu0 0.0
        %608 = vmatprep.subr.mxu0 0.0
        %609 = vmatpush1.msra.mxu0 0.0
        %610 = vmatprep.subr.mxu0 0.0
        %611 = vmatpush1.msra.mxu0 0.0
        %612 = vmatprep.subr.mxu0 0.0
        %613 = vmatpush1.msra.mxu0 0.0
        %614 = vmatprep.subr.mxu0 0.0
        %615 = vmatpush1.msra.mxu0 0.0
        %616 = vmatprep.subr.mxu0 0.0
        %617 = vmatpush1.msra.mxu0 0.0
        %618 = vmatprep.subr.mxu0 0.0
        %619 = vmatpush1.msra.mxu0 0.0
        %620 = vmatprep.subr.mxu0 0.0
        %621 = vmatpush1.msra.mxu0 0.0
        %622 = vmatprep.subr.mxu0 0.0
        %623 = vmatpush1.msra.mxu0 0.0
        %624 = vmatprep.subr.mxu0 0.0
        %625 = vmatpush1.msra.mxu0 0.0
        %626 = vmatprep.subr.mxu0 0.0
        %627 = vmatpush1.msra.mxu0 %v523
        %628 = vmatprep.subr.mxu0 0.0
        %629 = vmatpush2.msra.mxu0 0.0
        %630 = vmatprep.subr.mxu0 0.0
        %631 = vmatpush2.msra.mxu0 0.0
        %632 = vmatprep.subr.mxu0 0.0
        %633 = vmatpush2.msra.mxu0 0.0
        %634 = vmatprep.subr.mxu0 0.0
        %635 = vmatpush2.msra.mxu0 0.0
        %636 = vmatprep.subr.mxu0 0.0
        %637 = vmatpush2.msra.mxu0 0.0
        %638 = vmatprep.subr.mxu0 0.0
        %639 = vmatpush2.msra.mxu0 0.0
        %640 = vmatprep.subr.mxu0 0.0
        %641 = vmatpush2.msra.mxu0 0.0
        %642 = vmatprep.subr.mxu0 0.0
        %643 = vmatpush2.msra.mxu0 0.0
        %644 = vmatprep.subr.mxu0 0.0
        %645 = vmatpush2.msra.mxu0 0.0
        %646 = vmatprep.subr.mxu0 0.0
        %647 = vmatpush2.msra.mxu0 0.0
        %648 = vmatprep.subr.mxu0 0.0
        %649 = vmatpush2.msra.mxu0 0.0
        %650 = vmatprep.subr.mxu0 0.0
        %651 = vmatpush2.msra.mxu0 0.0
        %652 = vmatprep.subr.mxu0 0.0
        %653 = vmatpush2.msra.mxu0 0.0
        %654 = vmatprep.subr.mxu0 0.0
        %655 = vmatpush2.msra.mxu0 0.0
        %656 = vmatprep.subr.mxu0 0.0
        %657 = vmatpush2.msra.mxu0 0.0
        %658 = vmatprep.subr.mxu0 0.0
        %659 = vmatpush2.msra.mxu0 0.0
        %660 = vmatprep.mubr.f32.mxu0 0.0
        %661 = vmatmul.mubr.f32.gmra.mxu0 %v514
        %v662 = vpop.f32.mrf.mxu0
        %v663 = vadd.f32 0.0, %v662
        %v664 = vpop.f32.mrf.mxu0
        %665 = vdwg.mxu0
        %v666 = vadd.f32 %v425, %v592
        %v667 = vadd.f32 %v427, %v594
        %v668 = vadd.f32 %v496, %v663
        %669 = vrot.lane.b32.xlu0 %v169, 110
        %v670 = vpop.permute.xlu0 %669
        %671 = vrot.lane.b32.xlu0 %v174, 110
        %v672 = vpop.permute.xlu0 %671
        %673 = vrot.lane.b32.xlu0 %v170, 110
        %v674 = vpop.permute.xlu0 %673
        %675 = vrot.lane.b32.xlu0 %v175, 110
        %v676 = vpop.permute.xlu0 %675
        %vm677 = vcmp.lt.s32.totalorder %v187, 110
        %v678 = vsel %vm677, %v674, %v676
        %v679 = vsel %vm677, %v672, %v674
        %v680 = vsel %vm677, %v670, %v672
        %s681 = scalar_lea.vmem %s1, 24
        %v682 = vld [vmem:[%s681] sm:$0xff]
        %v684 = vsel %vm194, %v682, 0
        %v687 = vsel %vm198, %v680, 0
        %v690 = vsel %vm198, %v679, 0
        %v693 = vsel %vm198, %v678, 0
        %695 = vmatprep.subr.mxu0 0.0
        %696 = vmatpush1.msra.mxu0 0.0
        %697 = vmatprep.subr.mxu0 0.0
        %698 = vmatpush1.msra.mxu0 0.0
        %699 = vmatprep.subr.mxu0 0.0
        %700 = vmatpush1.msra.mxu0 0.0
        %701 = vmatprep.subr.mxu0 0.0
        %702 = vmatpush1.msra.mxu0 0.0
        %703 = vmatprep.subr.mxu0 0.0
        %704 = vmatpush1.msra.mxu0 0.0
        %705 = vmatprep.subr.mxu0 0.0
        %706 = vmatpush1.msra.mxu0 0.0
        %707 = vmatprep.subr.mxu0 0.0
        %708 = vmatpush1.msra.mxu0 0.0
        %709 = vmatprep.subr.mxu0 0.0
        %710 = vmatpush1.msra.mxu0 0.0
        %711 = vmatprep.subr.mxu0 0.0
        %712 = vmatpush1.msra.mxu0 0.0
        %713 = vmatprep.subr.mxu0 0.0
        %714 = vmatpush1.msra.mxu0 0.0
        %715 = vmatprep.subr.mxu0 0.0
        %716 = vmatpush1.msra.mxu0 0.0
        %717 = vmatprep.subr.mxu0 0.0
        %718 = vmatpush1.msra.mxu0 0.0
        %719 = vmatprep.subr.mxu0 0.0
        %720 = vmatpush1.msra.mxu0 0.0
        %721 = vmatprep.subr.mxu0 0.0
        %722 = vmatpush1.msra.mxu0 0.0
        %723 = vmatprep.subr.mxu0 0.0
        %724 = vmatpush1.msra.mxu0 0.0
        %725 = vmatprep.subr.mxu0 %v690
        %726 = vmatpush1.msra.mxu0 %v687
        %727 = vmatprep.subr.mxu0 0.0
        %728 = vmatpush2.msra.mxu0 0.0
        %729 = vmatprep.subr.mxu0 0.0
        %730 = vmatpush2.msra.mxu0 0.0
        %731 = vmatprep.subr.mxu0 0.0
        %732 = vmatpush2.msra.mxu0 0.0
        %733 = vmatprep.subr.mxu0 0.0
        %734 = vmatpush2.msra.mxu0 0.0
        %735 = vmatprep.subr.mxu0 0.0
        %736 = vmatpush2.msra.mxu0 0.0
        %737 = vmatprep.subr.mxu0 0.0
        %738 = vmatpush2.msra.mxu0 0.0
        %739 = vmatprep.subr.mxu0 0.0
        %740 = vmatpush2.msra.mxu0 0.0
        %741 = vmatprep.subr.mxu0 0.0
        %742 = vmatpush2.msra.mxu0 0.0
        %743 = vmatprep.subr.mxu0 0.0
        %744 = vmatpush2.msra.mxu0 0.0
        %745 = vmatprep.subr.mxu0 0.0
        %746 = vmatpush2.msra.mxu0 0.0
        %747 = vmatprep.subr.mxu0 0.0
        %748 = vmatpush2.msra.mxu0 0.0
        %749 = vmatprep.subr.mxu0 0.0
        %750 = vmatpush2.msra.mxu0 0.0
        %751 = vmatprep.subr.mxu0 0.0
        %752 = vmatpush2.msra.mxu0 0.0
        %753 = vmatprep.subr.mxu0 0.0
        %754 = vmatpush2.msra.mxu0 0.0
        %755 = vmatprep.subr.mxu0 0.0
        %756 = vmatpush2.msra.mxu0 0.0
        %757 = vmatprep.subr.mxu0 0.0
        %758 = vmatpush2.msra.mxu0 0.0
        %759 = vmatprep.mubr.f32.mxu0 0.0
        %760 = vmatmul.mubr.f32.gmra.mxu0 %v684
        %v761 = vpop.f32.mrf.mxu0
        %v762 = vadd.f32 0.0, %v761
        %v763 = vpop.f32.mrf.mxu0
        %v764 = vadd.f32 0.0, %v763
        %765 = vdwg.mxu0
        %766 = vmatprep.subr.mxu0 0.0
        %767 = vmatpush1.msra.mxu0 0.0
        %768 = vmatprep.subr.mxu0 0.0
        %769 = vmatpush1.msra.mxu0 0.0
        %770 = vmatprep.subr.mxu0 0.0
        %771 = vmatpush1.msra.mxu0 0.0
        %772 = vmatprep.subr.mxu0 0.0
        %773 = vmatpush1.msra.mxu0 0.0
        %774 = vmatprep.subr.mxu0 0.0
        %775 = vmatpush1.msra.mxu0 0.0
        %776 = vmatprep.subr.mxu0 0.0
        %777 = vmatpush1.msra.mxu0 0.0
        %778 = vmatprep.subr.mxu0 0.0
        %779 = vmatpush1.msra.mxu0 0.0
        %780 = vmatprep.subr.mxu0 0.0
        %781 = vmatpush1.msra.mxu0 0.0
        %782 = vmatprep.subr.mxu0 0.0
        %783 = vmatpush1.msra.mxu0 0.0
        %784 = vmatprep.subr.mxu0 0.0
        %785 = vmatpush1.msra.mxu0 0.0
        %786 = vmatprep.subr.mxu0 0.0
        %787 = vmatpush1.msra.mxu0 0.0
        %788 = vmatprep.subr.mxu0 0.0
        %789 = vmatpush1.msra.mxu0 0.0
        %790 = vmatprep.subr.mxu0 0.0
        %791 = vmatpush1.msra.mxu0 0.0
        %792 = vmatprep.subr.mxu0 0.0
        %793 = vmatpush1.msra.mxu0 0.0
        %794 = vmatprep.subr.mxu0 0.0
        %795 = vmatpush1.msra.mxu0 0.0
        %796 = vmatprep.subr.mxu0 0.0
        %797 = vmatpush1.msra.mxu0 %v693
        %798 = vmatprep.subr.mxu0 0.0
        %799 = vmatpush2.msra.mxu0 0.0
        %800 = vmatprep.subr.mxu0 0.0
        %801 = vmatpush2.msra.mxu0 0.0
        %802 = vmatprep.subr.mxu0 0.0
        %803 = vmatpush2.msra.mxu0 0.0
        %804 = vmatprep.subr.mxu0 0.0
        %805 = vmatpush2.msra.mxu0 0.0
        %806 = vmatprep.subr.mxu0 0.0
        %807 = vmatpush2.msra.mxu0 0.0
        %808 = vmatprep.subr.mxu0 0.0
        %809 = vmatpush2.msra.mxu0 0.0
        %810 = vmatprep.subr.mxu0 0.0
        %811 = vmatpush2.msra.mxu0 0.0
        %812 = vmatprep.subr.mxu0 0.0
        %813 = vmatpush2.msra.mxu0 0.0
        %814 = vmatprep.subr.mxu0 0.0
        %815 = vmatpush2.msra.mxu0 0.0
        %816 = vmatprep.subr.mxu0 0.0
        %817 = vmatpush2.msra.mxu0 0.0
        %818 = vmatprep.subr.mxu0 0.0
        %819 = vmatpush2.msra.mxu0 0.0
        %820 = vmatprep.subr.mxu0 0.0
        %821 = vmatpush2.msra.mxu0 0.0
        %822 = vmatprep.subr.mxu0 0.0
        %823 = vmatpush2.msra.mxu0 0.0
        %824 = vmatprep.subr.mxu0 0.0
        %825 = vmatpush2.msra.mxu0 0.0
        %826 = vmatprep.subr.mxu0 0.0
        %827 = vmatpush2.msra.mxu0 0.0
        %828 = vmatprep.subr.mxu0 0.0
        %829 = vmatpush2.msra.mxu0 0.0
        %830 = vmatprep.mubr.f32.mxu0 0.0
        %831 = vmatmul.mubr.f32.gmra.mxu0 %v684
        %v832 = vpop.f32.mrf.mxu0
        %v833 = vadd.f32 0.0, %v832
        %v834 = vpop.f32.mrf.mxu0
        %835 = vdwg.mxu0
        %v836 = vadd.f32 %v666, %v762
        %v837 = vadd.f32 %v667, %v764
        %v838 = vadd.f32 %v668, %v833
        %839 = vrot.lane.b32.xlu0 %v169, 109
        %v840 = vpop.permute.xlu0 %839
        %841 = vrot.lane.b32.xlu0 %v174, 109
        %v842 = vpop.permute.xlu0 %841
        %843 = vrot.lane.b32.xlu0 %v170, 109
        %v844 = vpop.permute.xlu0 %843
        %845 = vrot.lane.b32.xlu0 %v175, 109
        %v846 = vpop.permute.xlu0 %845
        %vm847 = vcmp.lt.s32.totalorder %v187, 109
        %v848 = vsel %vm847, %v844, %v846
        %v849 = vsel %vm847, %v842, %v844
        %v850 = vsel %vm847, %v840, %v842
        %s851 = scalar_lea.vmem %s1, 32
        %v852 = vld [vmem:[%s851] sm:$0xff]
        %v854 = vsel %vm194, %v852, 0
        %v857 = vsel %vm198, %v850, 0
        %v860 = vsel %vm198, %v849, 0
        %v863 = vsel %vm198, %v848, 0
        %865 = vmatprep.subr.mxu0 0.0
        %866 = vmatpush1.msra.mxu0 0.0
        %867 = vmatprep.subr.mxu0 0.0
        %868 = vmatpush1.msra.mxu0 0.0
        %869 = vmatprep.subr.mxu0 0.0
        %870 = vmatpush1.msra.mxu0 0.0
        %871 = vmatprep.subr.mxu0 0.0
        %872 = vmatpush1.msra.mxu0 0.0
        %873 = vmatprep.subr.mxu0 0.0
        %874 = vmatpush1.msra.mxu0 0.0
        %875 = vmatprep.subr.mxu0 0.0
        %876 = vmatpush1.msra.mxu0 0.0
        %877 = vmatprep.subr.mxu0 0.0
        %878 = vmatpush1.msra.mxu0 0.0
        %879 = vmatprep.subr.mxu0 0.0
        %880 = vmatpush1.msra.mxu0 0.0
        %881 = vmatprep.subr.mxu0 0.0
        %882 = vmatpush1.msra.mxu0 0.0
        %883 = vmatprep.subr.mxu0 0.0
        %884 = vmatpush1.msra.mxu0 0.0
        %885 = vmatprep.subr.mxu0 0.0
        %886 = vmatpush1.msra.mxu0 0.0
        %887 = vmatprep.subr.mxu0 0.0
        %888 = vmatpush1.msra.mxu0 0.0
        %889 = vmatprep.subr.mxu0 0.0
        %890 = vmatpush1.msra.mxu0 0.0
        %891 = vmatprep.subr.mxu0 0.0
        %892 = vmatpush1.msra.mxu0 0.0
        %893 = vmatprep.subr.mxu0 0.0
        %894 = vmatpush1.msra.mxu0 0.0
        %895 = vmatprep.subr.mxu0 %v860
        %896 = vmatpush1.msra.mxu0 %v857
        %897 = vmatprep.subr.mxu0 0.0
        %898 = vmatpush2.msra.mxu0 0.0
        %899 = vmatprep.subr.mxu0 0.0
        %900 = vmatpush2.msra.mxu0 0.0
        %901 = vmatprep.subr.mxu0 0.0
        %902 = vmatpush2.msra.mxu0 0.0
        %903 = vmatprep.subr.mxu0 0.0
        %904 = vmatpush2.msra.mxu0 0.0
        %905 = vmatprep.subr.mxu0 0.0
        %906 = vmatpush2.msra.mxu0 0.0
        %907 = vmatprep.subr.mxu0 0.0
        %908 = vmatpush2.msra.mxu0 0.0
        %909 = vmatprep.subr.mxu0 0.0
        %910 = vmatpush2.msra.mxu0 0.0
        %911 = vmatprep.subr.mxu0 0.0
        %912 = vmatpush2.msra.mxu0 0.0
        %913 = vmatprep.subr.mxu0 0.0
        %914 = vmatpush2.msra.mxu0 0.0
        %915 = vmatprep.subr.mxu0 0.0
        %916 = vmatpush2.msra.mxu0 0.0
        %917 = vmatprep.subr.mxu0 0.0
        %918 = vmatpush2.msra.mxu0 0.0
        %919 = vmatprep.subr.mxu0 0.0
        %920 = vmatpush2.msra.mxu0 0.0
        %921 = vmatprep.subr.mxu0 0.0
        %922 = vmatpush2.msra.mxu0 0.0
        %923 = vmatprep.subr.mxu0 0.0
        %924 = vmatpush2.msra.mxu0 0.0
        %925 = vmatprep.subr.mxu0 0.0
        %926 = vmatpush2.msra.mxu0 0.0
        %927 = vmatprep.subr.mxu0 0.0
        %928 = vmatpush2.msra.mxu0 0.0
        %929 = vmatprep.mubr.f32.mxu0 0.0
        %930 = vmatmul.mubr.f32.gmra.mxu0 %v854
        %v931 = vpop.f32.mrf.mxu0
        %v932 = vadd.f32 0.0, %v931
        %v933 = vpop.f32.mrf.mxu0
        %v934 = vadd.f32 0.0, %v933
        %935 = vdwg.mxu0
        %936 = vmatprep.subr.mxu0 0.0
        %937 = vmatpush1.msra.mxu0 0.0
        %938 = vmatprep.subr.mxu0 0.0
        %939 = vmatpush1.msra.mxu0 0.0
        %940 = vmatprep.subr.mxu0 0.0
        %941 = vmatpush1.msra.mxu0 0.0
        %942 = vmatprep.subr.mxu0 0.0
        %943 = vmatpush1.msra.mxu0 0.0
        %944 = vmatprep.subr.mxu0 0.0
        %945 = vmatpush1.msra.mxu0 0.0
        %946 = vmatprep.subr.mxu0 0.0
        %947 = vmatpush1.msra.mxu0 0.0
        %948 = vmatprep.subr.mxu0 0.0
        %949 = vmatpush1.msra.mxu0 0.0
        %950 = vmatprep.subr.mxu0 0.0
        %951 = vmatpush1.msra.mxu0 0.0
        %952 = vmatprep.subr.mxu0 0.0
        %953 = vmatpush1.msra.mxu0 0.0
        %954 = vmatprep.subr.mxu0 0.0
        %955 = vmatpush1.msra.mxu0 0.0
        %956 = vmatprep.subr.mxu0 0.0
        %957 = vmatpush1.msra.mxu0 0.0
        %958 = vmatprep.subr.mxu0 0.0
        %959 = vmatpush1.msra.mxu0 0.0
        %960 = vmatprep.subr.mxu0 0.0
        %961 = vmatpush1.msra.mxu0 0.0
        %962 = vmatprep.subr.mxu0 0.0
        %963 = vmatpush1.msra.mxu0 0.0
        %964 = vmatprep.subr.mxu0 0.0
        %965 = vmatpush1.msra.mxu0 0.0
        %966 = vmatprep.subr.mxu0 0.0
        %967 = vmatpush1.msra.mxu0 %v863
        %968 = vmatprep.subr.mxu0 0.0
        %969 = vmatpush2.msra.mxu0 0.0
        %970 = vmatprep.subr.mxu0 0.0
        %971 = vmatpush2.msra.mxu0 0.0
        %972 = vmatprep.subr.mxu0 0.0
        %973 = vmatpush2.msra.mxu0 0.0
        %974 = vmatprep.subr.mxu0 0.0
        %975 = vmatpush2.msra.mxu0 0.0
        %976 = vmatprep.subr.mxu0 0.0
        %977 = vmatpush2.msra.mxu0 0.0
        %978 = vmatprep.subr.mxu0 0.0
        %979 = vmatpush2.msra.mxu0 0.0
        %980 = vmatprep.subr.mxu0 0.0
        %981 = vmatpush2.msra.mxu0 0.0
        %982 = vmatprep.subr.mxu0 0.0
        %983 = vmatpush2.msra.mxu0 0.0
        %984 = vmatprep.subr.mxu0 0.0
        %985 = vmatpush2.msra.mxu0 0.0
        %986 = vmatprep.subr.mxu0 0.0
        %987 = vmatpush2.msra.mxu0 0.0
        %988 = vmatprep.subr.mxu0 0.0
        %989 = vmatpush2.msra.mxu0 0.0
        %990 = vmatprep.subr.mxu0 0.0
        %991 = vmatpush2.msra.mxu0 0.0
        %992 = vmatprep.subr.mxu0 0.0
        %993 = vmatpush2.msra.mxu0 0.0
        %994 = vmatprep.subr.mxu0 0.0
        %995 = vmatpush2.msra.mxu0 0.0
        %996 = vmatprep.subr.mxu0 0.0
        %997 = vmatpush2.msra.mxu0 0.0
        %998 = vmatprep.subr.mxu0 0.0
        %999 = vmatpush2.msra.mxu0 0.0
        %1000 = vmatprep.mubr.f32.mxu0 0.0
        %1001 = vmatmul.mubr.f32.gmra.mxu0 %v854
        %v1002 = vpop.f32.mrf.mxu0
        %v1003 = vadd.f32 0.0, %v1002
        %v1004 = vpop.f32.mrf.mxu0
        %1005 = vdwg.mxu0
        %v1006 = vadd.f32 %v836, %v932
        %v1007 = vadd.f32 %v837, %v934
        %v1008 = vadd.f32 %v838, %v1003
        %1009 = vrot.lane.b32.xlu0 %v169, 108
        %v1010 = vpop.permute.xlu0 %1009
        %1011 = vrot.lane.b32.xlu0 %v174, 108
        %v1012 = vpop.permute.xlu0 %1011
        %1013 = vrot.lane.b32.xlu0 %v170, 108
        %v1014 = vpop.permute.xlu0 %1013
        %1015 = vrot.lane.b32.xlu0 %v175, 108
        %v1016 = vpop.permute.xlu0 %1015
        %vm1017 = vcmp.lt.s32.totalorder %v187, 108
        %v1018 = vsel %vm1017, %v1014, %v1016
        %v1019 = vsel %vm1017, %v1012, %v1014
        %v1020 = vsel %vm1017, %v1010, %v1012
        %s1021 = scalar_lea.vmem %s1, 40
        %v1022 = vld [vmem:[%s1021] sm:$0xff]
        %v1024 = vsel %vm194, %v1022, 0
        %v1027 = vsel %vm198, %v1020, 0
        %v1030 = vsel %vm198, %v1019, 0
        %v1033 = vsel %vm198, %v1018, 0
        %1035 = vmatprep.subr.mxu0 0.0
        %1036 = vmatpush1.msra.mxu0 0.0
        %1037 = vmatprep.subr.mxu0 0.0
        %1038 = vmatpush1.msra.mxu0 0.0
        %1039 = vmatprep.subr.mxu0 0.0
        %1040 = vmatpush1.msra.mxu0 0.0
        %1041 = vmatprep.subr.mxu0 0.0
        %1042 = vmatpush1.msra.mxu0 0.0
        %1043 = vmatprep.subr.mxu0 0.0
        %1044 = vmatpush1.msra.mxu0 0.0
        %1045 = vmatprep.subr.mxu0 0.0
        %1046 = vmatpush1.msra.mxu0 0.0
        %1047 = vmatprep.subr.mxu0 0.0
        %1048 = vmatpush1.msra.mxu0 0.0
        %1049 = vmatprep.subr.mxu0 0.0
        %1050 = vmatpush1.msra.mxu0 0.0
        %1051 = vmatprep.subr.mxu0 0.0
        %1052 = vmatpush1.msra.mxu0 0.0
        %1053 = vmatprep.subr.mxu0 0.0
        %1054 = vmatpush1.msra.mxu0 0.0
        %1055 = vmatprep.subr.mxu0 0.0
        %1056 = vmatpush1.msra.mxu0 0.0
        %1057 = vmatprep.subr.mxu0 0.0
        %1058 = vmatpush1.msra.mxu0 0.0
        %1059 = vmatprep.subr.mxu0 0.0
        %1060 = vmatpush1.msra.mxu0 0.0
        %1061 = vmatprep.subr.mxu0 0.0
        %1062 = vmatpush1.msra.mxu0 0.0
        %1063 = vmatprep.subr.mxu0 0.0
        %1064 = vmatpush1.msra.mxu0 0.0
        %1065 = vmatprep.subr.mxu0 %v1030
        %1066 = vmatpush1.msra.mxu0 %v1027
        %1067 = vmatprep.subr.mxu0 0.0
        %1068 = vmatpush2.msra.mxu0 0.0
        %1069 = vmatprep.subr.mxu0 0.0
        %1070 = vmatpush2.msra.mxu0 0.0
        %1071 = vmatprep.subr.mxu0 0.0
        %1072 = vmatpush2.msra.mxu0 0.0
        %1073 = vmatprep.subr.mxu0 0.0
        %1074 = vmatpush2.msra.mxu0 0.0
        %1075 = vmatprep.subr.mxu0 0.0
        %1076 = vmatpush2.msra.mxu0 0.0
        %1077 = vmatprep.subr.mxu0 0.0
        %1078 = vmatpush2.msra.mxu0 0.0
        %1079 = vmatprep.subr.mxu0 0.0
        %1080 = vmatpush2.msra.mxu0 0.0
        %1081 = vmatprep.subr.mxu0 0.0
        %1082 = vmatpush2.msra.mxu0 0.0
        %1083 = vmatprep.subr.mxu0 0.0
        %1084 = vmatpush2.msra.mxu0 0.0
        %1085 = vmatprep.subr.mxu0 0.0
        %1086 = vmatpush2.msra.mxu0 0.0
        %1087 = vmatprep.subr.mxu0 0.0
        %1088 = vmatpush2.msra.mxu0 0.0
        %1089 = vmatprep.subr.mxu0 0.0
        %1090 = vmatpush2.msra.mxu0 0.0
        %1091 = vmatprep.subr.mxu0 0.0
        %1092 = vmatpush2.msra.mxu0 0.0
        %1093 = vmatprep.subr.mxu0 0.0
        %1094 = vmatpush2.msra.mxu0 0.0
        %1095 = vmatprep.subr.mxu0 0.0
        %1096 = vmatpush2.msra.mxu0 0.0
        %1097 = vmatprep.subr.mxu0 0.0
        %1098 = vmatpush2.msra.mxu0 0.0
        %1099 = vmatprep.mubr.f32.mxu0 0.0
        %1100 = vmatmul.mubr.f32.gmra.mxu0 %v1024
        %v1101 = vpop.f32.mrf.mxu0
        %v1102 = vadd.f32 0.0, %v1101
        %v1103 = vpop.f32.mrf.mxu0
        %v1104 = vadd.f32 0.0, %v1103
        %1105 = vdwg.mxu0
        %1106 = vmatprep.subr.mxu0 0.0
        %1107 = vmatpush1.msra.mxu0 0.0
        %1108 = vmatprep.subr.mxu0 0.0
        %1109 = vmatpush1.msra.mxu0 0.0
        %1110 = vmatprep.subr.mxu0 0.0
        %1111 = vmatpush1.msra.mxu0 0.0
        %1112 = vmatprep.subr.mxu0 0.0
        %1113 = vmatpush1.msra.mxu0 0.0
        %1114 = vmatprep.subr.mxu0 0.0
        %1115 = vmatpush1.msra.mxu0 0.0
        %1116 = vmatprep.subr.mxu0 0.0
        %1117 = vmatpush1.msra.mxu0 0.0
        %1118 = vmatprep.subr.mxu0 0.0
        %1119 = vmatpush1.msra.mxu0 0.0
        %1120 = vmatprep.subr.mxu0 0.0
        %1121 = vmatpush1.msra.mxu0 0.0
        %1122 = vmatprep.subr.mxu0 0.0
        %1123 = vmatpush1.msra.mxu0 0.0
        %1124 = vmatprep.subr.mxu0 0.0
        %1125 = vmatpush1.msra.mxu0 0.0
        %1126 = vmatprep.subr.mxu0 0.0
        %1127 = vmatpush1.msra.mxu0 0.0
        %1128 = vmatprep.subr.mxu0 0.0
        %1129 = vmatpush1.msra.mxu0 0.0
        %1130 = vmatprep.subr.mxu0 0.0
        %1131 = vmatpush1.msra.mxu0 0.0
        %1132 = vmatprep.subr.mxu0 0.0
        %1133 = vmatpush1.msra.mxu0 0.0
        %1134 = vmatprep.subr.mxu0 0.0
        %1135 = vmatpush1.msra.mxu0 0.0
        %1136 = vmatprep.subr.mxu0 0.0
        %1137 = vmatpush1.msra.mxu0 %v1033
        %1138 = vmatprep.subr.mxu0 0.0
        %1139 = vmatpush2.msra.mxu0 0.0
        %1140 = vmatprep.subr.mxu0 0.0
        %1141 = vmatpush2.msra.mxu0 0.0
        %1142 = vmatprep.subr.mxu0 0.0
        %1143 = vmatpush2.msra.mxu0 0.0
        %1144 = vmatprep.subr.mxu0 0.0
        %1145 = vmatpush2.msra.mxu0 0.0
        %1146 = vmatprep.subr.mxu0 0.0
        %1147 = vmatpush2.msra.mxu0 0.0
        %1148 = vmatprep.subr.mxu0 0.0
        %1149 = vmatpush2.msra.mxu0 0.0
        %1150 = vmatprep.subr.mxu0 0.0
        %1151 = vmatpush2.msra.mxu0 0.0
        %1152 = vmatprep.subr.mxu0 0.0
        %1153 = vmatpush2.msra.mxu0 0.0
        %1154 = vmatprep.subr.mxu0 0.0
        %1155 = vmatpush2.msra.mxu0 0.0
        %1156 = vmatprep.subr.mxu0 0.0
        %1157 = vmatpush2.msra.mxu0 0.0
        %1158 = vmatprep.subr.mxu0 0.0
        %1159 = vmatpush2.msra.mxu0 0.0
        %1160 = vmatprep.subr.mxu0 0.0
        %1161 = vmatpush2.msra.mxu0 0.0
        %1162 = vmatprep.subr.mxu0 0.0
        %1163 = vmatpush2.msra.mxu0 0.0
        %1164 = vmatprep.subr.mxu0 0.0
        %1165 = vmatpush2.msra.mxu0 0.0
        %1166 = vmatprep.subr.mxu0 0.0
        %1167 = vmatpush2.msra.mxu0 0.0
        %1168 = vmatprep.subr.mxu0 0.0
        %1169 = vmatpush2.msra.mxu0 0.0
        %1170 = vmatprep.mubr.f32.mxu0 0.0
        %1171 = vmatmul.mubr.f32.gmra.mxu0 %v1024
        %v1172 = vpop.f32.mrf.mxu0
        %v1173 = vadd.f32 0.0, %v1172
        %v1174 = vpop.f32.mrf.mxu0
        %1175 = vdwg.mxu0
        %v1176 = vadd.f32 %v1006, %v1102
        %v1177 = vadd.f32 %v1007, %v1104
        %v1178 = vadd.f32 %v1008, %v1173
        %1179 = vrot.lane.b32.xlu0 %v169, 92
        %v1180 = vpop.permute.xlu0 %1179
        %1181 = vrot.lane.b32.xlu0 %v174, 92
        %v1182 = vpop.permute.xlu0 %1181
        %1183 = vrot.lane.b32.xlu0 %v170, 92
        %v1184 = vpop.permute.xlu0 %1183
        %1185 = vrot.lane.b32.xlu0 %v175, 92
        %v1186 = vpop.permute.xlu0 %1185
        %vm1187 = vcmp.lt.s32.totalorder %v187, 92
        %v1188 = vsel %vm1187, %v1184, %v1186
        %v1189 = vsel %vm1187, %v1182, %v1184
        %v1190 = vsel %vm1187, %v1180, %v1182
        %s1191 = scalar_lea.vmem %s1, 48
        %v1192 = vld [vmem:[%s1191] sm:$0xff]
        %v1194 = vsel %vm194, %v1192, 0
        %v1197 = vsel %vm198, %v1190, 0
        %v1200 = vsel %vm198, %v1189, 0
        %v1203 = vsel %vm198, %v1188, 0
        %1205 = vmatprep.subr.mxu0 0.0
        %1206 = vmatpush1.msra.mxu0 0.0
        %1207 = vmatprep.subr.mxu0 0.0
        %1208 = vmatpush1.msra.mxu0 0.0
        %1209 = vmatprep.subr.mxu0 0.0
        %1210 = vmatpush1.msra.mxu0 0.0
        %1211 = vmatprep.subr.mxu0 0.0
        %1212 = vmatpush1.msra.mxu0 0.0
        %1213 = vmatprep.subr.mxu0 0.0
        %1214 = vmatpush1.msra.mxu0 0.0
        %1215 = vmatprep.subr.mxu0 0.0
        %1216 = vmatpush1.msra.mxu0 0.0
        %1217 = vmatprep.subr.mxu0 0.0
        %1218 = vmatpush1.msra.mxu0 0.0
        %1219 = vmatprep.subr.mxu0 0.0
        %1220 = vmatpush1.msra.mxu0 0.0
        %1221 = vmatprep.subr.mxu0 0.0
        %1222 = vmatpush1.msra.mxu0 0.0
        %1223 = vmatprep.subr.mxu0 0.0
        %1224 = vmatpush1.msra.mxu0 0.0
        %1225 = vmatprep.subr.mxu0 0.0
        %1226 = vmatpush1.msra.mxu0 0.0
        %1227 = vmatprep.subr.mxu0 0.0
        %1228 = vmatpush1.msra.mxu0 0.0
        %1229 = vmatprep.subr.mxu0 0.0
        %1230 = vmatpush1.msra.mxu0 0.0
        %1231 = vmatprep.subr.mxu0 0.0
        %1232 = vmatpush1.msra.mxu0 0.0
        %1233 = vmatprep.subr.mxu0 0.0
        %1234 = vmatpush1.msra.mxu0 0.0
        %1235 = vmatprep.subr.mxu0 %v1200
        %1236 = vmatpush1.msra.mxu0 %v1197
        %1237 = vmatprep.subr.mxu0 0.0
        %1238 = vmatpush2.msra.mxu0 0.0
        %1239 = vmatprep.subr.mxu0 0.0
        %1240 = vmatpush2.msra.mxu0 0.0
        %1241 = vmatprep.subr.mxu0 0.0
        %1242 = vmatpush2.msra.mxu0 0.0
        %1243 = vmatprep.subr.mxu0 0.0
        %1244 = vmatpush2.msra.mxu0 0.0
        %1245 = vmatprep.subr.mxu0 0.0
        %1246 = vmatpush2.msra.mxu0 0.0
        %1247 = vmatprep.subr.mxu0 0.0
        %1248 = vmatpush2.msra.mxu0 0.0
        %1249 = vmatprep.subr.mxu0 0.0
        %1250 = vmatpush2.msra.mxu0 0.0
        %1251 = vmatprep.subr.mxu0 0.0
        %1252 = vmatpush2.msra.mxu0 0.0
        %1253 = vmatprep.subr.mxu0 0.0
        %1254 = vmatpush2.msra.mxu0 0.0
        %1255 = vmatprep.subr.mxu0 0.0
        %1256 = vmatpush2.msra.mxu0 0.0
        %1257 = vmatprep.subr.mxu0 0.0
        %1258 = vmatpush2.msra.mxu0 0.0
        %1259 = vmatprep.subr.mxu0 0.0
        %1260 = vmatpush2.msra.mxu0 0.0
        %1261 = vmatprep.subr.mxu0 0.0
        %1262 = vmatpush2.msra.mxu0 0.0
        %1263 = vmatprep.subr.mxu0 0.0
        %1264 = vmatpush2.msra.mxu0 0.0
        %1265 = vmatprep.subr.mxu0 0.0
        %1266 = vmatpush2.msra.mxu0 0.0
        %1267 = vmatprep.subr.mxu0 0.0
        %1268 = vmatpush2.msra.mxu0 0.0
        %1269 = vmatprep.mubr.f32.mxu0 0.0
        %1270 = vmatmul.mubr.f32.gmra.mxu0 %v1194
        %v1271 = vpop.f32.mrf.mxu0
        %v1272 = vadd.f32 0.0, %v1271
        %v1273 = vpop.f32.mrf.mxu0
        %v1274 = vadd.f32 0.0, %v1273
        %1275 = vdwg.mxu0
        %1276 = vmatprep.subr.mxu0 0.0
        %1277 = vmatpush1.msra.mxu0 0.0
        %1278 = vmatprep.subr.mxu0 0.0
        %1279 = vmatpush1.msra.mxu0 0.0
        %1280 = vmatprep.subr.mxu0 0.0
        %1281 = vmatpush1.msra.mxu0 0.0
        %1282 = vmatprep.subr.mxu0 0.0
        %1283 = vmatpush1.msra.mxu0 0.0
        %1284 = vmatprep.subr.mxu0 0.0
        %1285 = vmatpush1.msra.mxu0 0.0
        %1286 = vmatprep.subr.mxu0 0.0
        %1287 = vmatpush1.msra.mxu0 0.0
        %1288 = vmatprep.subr.mxu0 0.0
        %1289 = vmatpush1.msra.mxu0 0.0
        %1290 = vmatprep.subr.mxu0 0.0
        %1291 = vmatpush1.msra.mxu0 0.0
        %1292 = vmatprep.subr.mxu0 0.0
        %1293 = vmatpush1.msra.mxu0 0.0
        %1294 = vmatprep.subr.mxu0 0.0
        %1295 = vmatpush1.msra.mxu0 0.0
        %1296 = vmatprep.subr.mxu0 0.0
        %1297 = vmatpush1.msra.mxu0 0.0
        %1298 = vmatprep.subr.mxu0 0.0
        %1299 = vmatpush1.msra.mxu0 0.0
        %1300 = vmatprep.subr.mxu0 0.0
        %1301 = vmatpush1.msra.mxu0 0.0
        %1302 = vmatprep.subr.mxu0 0.0
        %1303 = vmatpush1.msra.mxu0 0.0
        %1304 = vmatprep.subr.mxu0 0.0
        %1305 = vmatpush1.msra.mxu0 0.0
        %1306 = vmatprep.subr.mxu0 0.0
        %1307 = vmatpush1.msra.mxu0 %v1203
        %1308 = vmatprep.subr.mxu0 0.0
        %1309 = vmatpush2.msra.mxu0 0.0
        %1310 = vmatprep.subr.mxu0 0.0
        %1311 = vmatpush2.msra.mxu0 0.0
        %1312 = vmatprep.subr.mxu0 0.0
        %1313 = vmatpush2.msra.mxu0 0.0
        %1314 = vmatprep.subr.mxu0 0.0
        %1315 = vmatpush2.msra.mxu0 0.0
        %1316 = vmatprep.subr.mxu0 0.0
        %1317 = vmatpush2.msra.mxu0 0.0
        %1318 = vmatprep.subr.mxu0 0.0
        %1319 = vmatpush2.msra.mxu0 0.0
        %1320 = vmatprep.subr.mxu0 0.0
        %1321 = vmatpush2.msra.mxu0 0.0
        %1322 = vmatprep.subr.mxu0 0.0
        %1323 = vmatpush2.msra.mxu0 0.0
        %1324 = vmatprep.subr.mxu0 0.0
        %1325 = vmatpush2.msra.mxu0 0.0
        %1326 = vmatprep.subr.mxu0 0.0
        %1327 = vmatpush2.msra.mxu0 0.0
        %1328 = vmatprep.subr.mxu0 0.0
        %1329 = vmatpush2.msra.mxu0 0.0
        %1330 = vmatprep.subr.mxu0 0.0
        %1331 = vmatpush2.msra.mxu0 0.0
        %1332 = vmatprep.subr.mxu0 0.0
        %1333 = vmatpush2.msra.mxu0 0.0
        %1334 = vmatprep.subr.mxu0 0.0
        %1335 = vmatpush2.msra.mxu0 0.0
        %1336 = vmatprep.subr.mxu0 0.0
        %1337 = vmatpush2.msra.mxu0 0.0
        %1338 = vmatprep.subr.mxu0 0.0
        %1339 = vmatpush2.msra.mxu0 0.0
        %1340 = vmatprep.mubr.f32.mxu0 0.0
        %1341 = vmatmul.mubr.f32.gmra.mxu0 %v1194
        %v1342 = vpop.f32.mrf.mxu0
        %v1343 = vadd.f32 0.0, %v1342
        %v1344 = vpop.f32.mrf.mxu0
        %1345 = vdwg.mxu0
        %v1346 = vadd.f32 %v1176, %v1272
        %v1347 = vadd.f32 %v1177, %v1274
        %v1348 = vadd.f32 %v1178, %v1343
        %1349 = vrot.lane.b32.xlu0 %v169, 91
        %v1350 = vpop.permute.xlu0 %1349
        %1351 = vrot.lane.b32.xlu0 %v174, 91
        %v1352 = vpop.permute.xlu0 %1351
        %1353 = vrot.lane.b32.xlu0 %v170, 91
        %v1354 = vpop.permute.xlu0 %1353
        %1355 = vrot.lane.b32.xlu0 %v175, 91
        %v1356 = vpop.permute.xlu0 %1355
        %vm1357 = vcmp.lt.s32.totalorder %v187, 91
        %v1358 = vsel %vm1357, %v1354, %v1356
        %v1359 = vsel %vm1357, %v1352, %v1354
        %v1360 = vsel %vm1357, %v1350, %v1352
        %s1361 = scalar_lea.vmem %s1, 56
        %v1362 = vld [vmem:[%s1361] sm:$0xff]
        %v1364 = vsel %vm194, %v1362, 0
        %v1367 = vsel %vm198, %v1360, 0
        %v1370 = vsel %vm198, %v1359, 0
        %v1373 = vsel %vm198, %v1358, 0
        %1375 = vmatprep.subr.mxu0 0.0
        %1376 = vmatpush1.msra.mxu0 0.0
        %1377 = vmatprep.subr.mxu0 0.0
        %1378 = vmatpush1.msra.mxu0 0.0
        %1379 = vmatprep.subr.mxu0 0.0
        %1380 = vmatpush1.msra.mxu0 0.0
        %1381 = vmatprep.subr.mxu0 0.0
        %1382 = vmatpush1.msra.mxu0 0.0
        %1383 = vmatprep.subr.mxu0 0.0
        %1384 = vmatpush1.msra.mxu0 0.0
        %1385 = vmatprep.subr.mxu0 0.0
        %1386 = vmatpush1.msra.mxu0 0.0
        %1387 = vmatprep.subr.mxu0 0.0
        %1388 = vmatpush1.msra.mxu0 0.0
        %1389 = vmatprep.subr.mxu0 0.0
        %1390 = vmatpush1.msra.mxu0 0.0
        %1391 = vmatprep.subr.mxu0 0.0
        %1392 = vmatpush1.msra.mxu0 0.0
        %1393 = vmatprep.subr.mxu0 0.0
        %1394 = vmatpush1.msra.mxu0 0.0
        %1395 = vmatprep.subr.mxu0 0.0
        %1396 = vmatpush1.msra.mxu0 0.0
        %1397 = vmatprep.subr.mxu0 0.0
        %1398 = vmatpush1.msra.mxu0 0.0
        %1399 = vmatprep.subr.mxu0 0.0
        %1400 = vmatpush1.msra.mxu0 0.0
        %1401 = vmatprep.subr.mxu0 0.0
        %1402 = vmatpush1.msra.mxu0 0.0
        %1403 = vmatprep.subr.mxu0 0.0
        %1404 = vmatpush1.msra.mxu0 0.0
        %1405 = vmatprep.subr.mxu0 %v1370
        %1406 = vmatpush1.msra.mxu0 %v1367
        %1407 = vmatprep.subr.mxu0 0.0
        %1408 = vmatpush2.msra.mxu0 0.0
        %1409 = vmatprep.subr.mxu0 0.0
        %1410 = vmatpush2.msra.mxu0 0.0
        %1411 = vmatprep.subr.mxu0 0.0
        %1412 = vmatpush2.msra.mxu0 0.0
        %1413 = vmatprep.subr.mxu0 0.0
        %1414 = vmatpush2.msra.mxu0 0.0
        %1415 = vmatprep.subr.mxu0 0.0
        %1416 = vmatpush2.msra.mxu0 0.0
        %1417 = vmatprep.subr.mxu0 0.0
        %1418 = vmatpush2.msra.mxu0 0.0
        %1419 = vmatprep.subr.mxu0 0.0
        %1420 = vmatpush2.msra.mxu0 0.0
        %1421 = vmatprep.subr.mxu0 0.0
        %1422 = vmatpush2.msra.mxu0 0.0
        %1423 = vmatprep.subr.mxu0 0.0
        %1424 = vmatpush2.msra.mxu0 0.0
        %1425 = vmatprep.subr.mxu0 0.0
        %1426 = vmatpush2.msra.mxu0 0.0
        %1427 = vmatprep.subr.mxu0 0.0
        %1428 = vmatpush2.msra.mxu0 0.0
        %1429 = vmatprep.subr.mxu0 0.0
        %1430 = vmatpush2.msra.mxu0 0.0
        %1431 = vmatprep.subr.mxu0 0.0
        %1432 = vmatpush2.msra.mxu0 0.0
        %1433 = vmatprep.subr.mxu0 0.0
        %1434 = vmatpush2.msra.mxu0 0.0
        %1435 = vmatprep.subr.mxu0 0.0
        %1436 = vmatpush2.msra.mxu0 0.0
        %1437 = vmatprep.subr.mxu0 0.0
        %1438 = vmatpush2.msra.mxu0 0.0
        %1439 = vmatprep.mubr.f32.mxu0 0.0
        %1440 = vmatmul.mubr.f32.gmra.mxu0 %v1364
        %v1441 = vpop.f32.mrf.mxu0
        %v1442 = vadd.f32 0.0, %v1441
        %v1443 = vpop.f32.mrf.mxu0
        %v1444 = vadd.f32 0.0, %v1443
        %1445 = vdwg.mxu0
        %1446 = vmatprep.subr.mxu0 0.0
        %1447 = vmatpush1.msra.mxu0 0.0
        %1448 = vmatprep.subr.mxu0 0.0
        %1449 = vmatpush1.msra.mxu0 0.0
        %1450 = vmatprep.subr.mxu0 0.0
        %1451 = vmatpush1.msra.mxu0 0.0
        %1452 = vmatprep.subr.mxu0 0.0
        %1453 = vmatpush1.msra.mxu0 0.0
        %1454 = vmatprep.subr.mxu0 0.0
        %1455 = vmatpush1.msra.mxu0 0.0
        %1456 = vmatprep.subr.mxu0 0.0
        %1457 = vmatpush1.msra.mxu0 0.0
        %1458 = vmatprep.subr.mxu0 0.0
        %1459 = vmatpush1.msra.mxu0 0.0
        %1460 = vmatprep.subr.mxu0 0.0
        %1461 = vmatpush1.msra.mxu0 0.0
        %1462 = vmatprep.subr.mxu0 0.0
        %1463 = vmatpush1.msra.mxu0 0.0
        %1464 = vmatprep.subr.mxu0 0.0
        %1465 = vmatpush1.msra.mxu0 0.0
        %1466 = vmatprep.subr.mxu0 0.0
        %1467 = vmatpush1.msra.mxu0 0.0
        %1468 = vmatprep.subr.mxu0 0.0
        %1469 = vmatpush1.msra.mxu0 0.0
        %1470 = vmatprep.subr.mxu0 0.0
        %1471 = vmatpush1.msra.mxu0 0.0
        %1472 = vmatprep.subr.mxu0 0.0
        %1473 = vmatpush1.msra.mxu0 0.0
        %1474 = vmatprep.subr.mxu0 0.0
        %1475 = vmatpush1.msra.mxu0 0.0
        %1476 = vmatprep.subr.mxu0 0.0
        %1477 = vmatpush1.msra.mxu0 %v1373
        %1478 = vmatprep.subr.mxu0 0.0
        %1479 = vmatpush2.msra.mxu0 0.0
        %1480 = vmatprep.subr.mxu0 0.0
        %1481 = vmatpush2.msra.mxu0 0.0
        %1482 = vmatprep.subr.mxu0 0.0
        %1483 = vmatpush2.msra.mxu0 0.0
        %1484 = vmatprep.subr.mxu0 0.0
        %1485 = vmatpush2.msra.mxu0 0.0
        %1486 = vmatprep.subr.mxu0 0.0
        %1487 = vmatpush2.msra.mxu0 0.0
        %1488 = vmatprep.subr.mxu0 0.0
        %1489 = vmatpush2.msra.mxu0 0.0
        %1490 = vmatprep.subr.mxu0 0.0
        %1491 = vmatpush2.msra.mxu0 0.0
        %1492 = vmatprep.subr.mxu0 0.0
        %1493 = vmatpush2.msra.mxu0 0.0
        %1494 = vmatprep.subr.mxu0 0.0
        %1495 = vmatpush2.msra.mxu0 0.0
        %1496 = vmatprep.subr.mxu0 0.0
        %1497 = vmatpush2.msra.mxu0 0.0
        %1498 = vmatprep.subr.mxu0 0.0
        %1499 = vmatpush2.msra.mxu0 0.0
        %1500 = vmatprep.subr.mxu0 0.0
        %1501 = vmatpush2.msra.mxu0 0.0
        %1502 = vmatprep.subr.mxu0 0.0
        %1503 = vmatpush2.msra.mxu0 0.0
        %1504 = vmatprep.subr.mxu0 0.0
        %1505 = vmatpush2.msra.mxu0 0.0
        %1506 = vmatprep.subr.mxu0 0.0
        %1507 = vmatpush2.msra.mxu0 0.0
        %1508 = vmatprep.subr.mxu0 0.0
        %1509 = vmatpush2.msra.mxu0 0.0
        %1510 = vmatprep.mubr.f32.mxu0 0.0
        %1511 = vmatmul.mubr.f32.gmra.mxu0 %v1364
        %v1512 = vpop.f32.mrf.mxu0
        %v1513 = vadd.f32 0.0, %v1512
        %v1514 = vpop.f32.mrf.mxu0
        %1515 = vdwg.mxu0
        %v1516 = vadd.f32 %v1346, %v1442
        %v1517 = vadd.f32 %v1347, %v1444
        %v1518 = vadd.f32 %v1348, %v1513
        %1519 = vrot.lane.b32.xlu0 %v169, 90
        %v1520 = vpop.permute.xlu0 %1519
        %1521 = vrot.lane.b32.xlu0 %v174, 90
        %v1522 = vpop.permute.xlu0 %1521
        %1523 = vrot.lane.b32.xlu0 %v170, 90
        %v1524 = vpop.permute.xlu0 %1523
        %1525 = vrot.lane.b32.xlu0 %v175, 90
        %v1526 = vpop.permute.xlu0 %1525
        %vm1527 = vcmp.lt.s32.totalorder %v187, 90
        %v1528 = vsel %vm1527, %v1524, %v1526
        %v1529 = vsel %vm1527, %v1522, %v1524
        %v1530 = vsel %vm1527, %v1520, %v1522
        %s1531 = scalar_lea.vmem %s1, 64
        %v1532 = vld [vmem:[%s1531] sm:$0xff]
        %v1534 = vsel %vm194, %v1532, 0
        %v1537 = vsel %vm198, %v1530, 0
        %v1540 = vsel %vm198, %v1529, 0
        %v1543 = vsel %vm198, %v1528, 0
        %1545 = vmatprep.subr.mxu0 0.0
        %1546 = vmatpush1.msra.mxu0 0.0
        %1547 = vmatprep.subr.mxu0 0.0
        %1548 = vmatpush1.msra.mxu0 0.0
        %1549 = vmatprep.subr.mxu0 0.0
        %1550 = vmatpush1.msra.mxu0 0.0
        %1551 = vmatprep.subr.mxu0 0.0
        %1552 = vmatpush1.msra.mxu0 0.0
        %1553 = vmatprep.subr.mxu0 0.0
        %1554 = vmatpush1.msra.mxu0 0.0
        %1555 = vmatprep.subr.mxu0 0.0
        %1556 = vmatpush1.msra.mxu0 0.0
        %1557 = vmatprep.subr.mxu0 0.0
        %1558 = vmatpush1.msra.mxu0 0.0
        %1559 = vmatprep.subr.mxu0 0.0
        %1560 = vmatpush1.msra.mxu0 0.0
        %1561 = vmatprep.subr.mxu0 0.0
        %1562 = vmatpush1.msra.mxu0 0.0
        %1563 = vmatprep.subr.mxu0 0.0
        %1564 = vmatpush1.msra.mxu0 0.0
        %1565 = vmatprep.subr.mxu0 0.0
        %1566 = vmatpush1.msra.mxu0 0.0
        %1567 = vmatprep.subr.mxu0 0.0
        %1568 = vmatpush1.msra.mxu0 0.0
        %1569 = vmatprep.subr.mxu0 0.0
        %1570 = vmatpush1.msra.mxu0 0.0
        %1571 = vmatprep.subr.mxu0 0.0
        %1572 = vmatpush1.msra.mxu0 0.0
        %1573 = vmatprep.subr.mxu0 0.0
        %1574 = vmatpush1.msra.mxu0 0.0
        %1575 = vmatprep.subr.mxu0 %v1540
        %1576 = vmatpush1.msra.mxu0 %v1537
        %1577 = vmatprep.subr.mxu0 0.0
        %1578 = vmatpush2.msra.mxu0 0.0
        %1579 = vmatprep.subr.mxu0 0.0
        %1580 = vmatpush2.msra.mxu0 0.0
        %1581 = vmatprep.subr.mxu0 0.0
        %1582 = vmatpush2.msra.mxu0 0.0
        %1583 = vmatprep.subr.mxu0 0.0
        %1584 = vmatpush2.msra.mxu0 0.0
        %1585 = vmatprep.subr.mxu0 0.0
        %1586 = vmatpush2.msra.mxu0 0.0
        %1587 = vmatprep.subr.mxu0 0.0
        %1588 = vmatpush2.msra.mxu0 0.0
        %1589 = vmatprep.subr.mxu0 0.0
        %1590 = vmatpush2.msra.mxu0 0.0
        %1591 = vmatprep.subr.mxu0 0.0
        %1592 = vmatpush2.msra.mxu0 0.0
        %1593 = vmatprep.subr.mxu0 0.0
        %1594 = vmatpush2.msra.mxu0 0.0
        %1595 = vmatprep.subr.mxu0 0.0
        %1596 = vmatpush2.msra.mxu0 0.0
        %1597 = vmatprep.subr.mxu0 0.0
        %1598 = vmatpush2.msra.mxu0 0.0
        %1599 = vmatprep.subr.mxu0 0.0
        %1600 = vmatpush2.msra.mxu0 0.0
        %1601 = vmatprep.subr.mxu0 0.0
        %1602 = vmatpush2.msra.mxu0 0.0
        %1603 = vmatprep.subr.mxu0 0.0
        %1604 = vmatpush2.msra.mxu0 0.0
        %1605 = vmatprep.subr.mxu0 0.0
        %1606 = vmatpush2.msra.mxu0 0.0
        %1607 = vmatprep.subr.mxu0 0.0
        %1608 = vmatpush2.msra.mxu0 0.0
        %1609 = vmatprep.mubr.f32.mxu0 0.0
        %1610 = vmatmul.mubr.f32.gmra.mxu0 %v1534
        %v1611 = vpop.f32.mrf.mxu0
        %v1612 = vadd.f32 0.0, %v1611
        %v1613 = vpop.f32.mrf.mxu0
        %v1614 = vadd.f32 0.0, %v1613
        %1615 = vdwg.mxu0
        %1616 = vmatprep.subr.mxu0 0.0
        %1617 = vmatpush1.msra.mxu0 0.0
        %1618 = vmatprep.subr.mxu0 0.0
        %1619 = vmatpush1.msra.mxu0 0.0
        %1620 = vmatprep.subr.mxu0 0.0
        %1621 = vmatpush1.msra.mxu0 0.0
        %1622 = vmatprep.subr.mxu0 0.0
        %1623 = vmatpush1.msra.mxu0 0.0
        %1624 = vmatprep.subr.mxu0 0.0
        %1625 = vmatpush1.msra.mxu0 0.0
        %1626 = vmatprep.subr.mxu0 0.0
        %1627 = vmatpush1.msra.mxu0 0.0
        %1628 = vmatprep.subr.mxu0 0.0
        %1629 = vmatpush1.msra.mxu0 0.0
        %1630 = vmatprep.subr.mxu0 0.0
        %1631 = vmatpush1.msra.mxu0 0.0
        %1632 = vmatprep.subr.mxu0 0.0
        %1633 = vmatpush1.msra.mxu0 0.0
        %1634 = vmatprep.subr.mxu0 0.0
        %1635 = vmatpush1.msra.mxu0 0.0
        %1636 = vmatprep.subr.mxu0 0.0
        %1637 = vmatpush1.msra.mxu0 0.0
        %1638 = vmatprep.subr.mxu0 0.0
        %1639 = vmatpush1.msra.mxu0 0.0
        %1640 = vmatprep.subr.mxu0 0.0
        %1641 = vmatpush1.msra.mxu0 0.0
        %1642 = vmatprep.subr.mxu0 0.0
        %1643 = vmatpush1.msra.mxu0 0.0
        %1644 = vmatprep.subr.mxu0 0.0
        %1645 = vmatpush1.msra.mxu0 0.0
        %1646 = vmatprep.subr.mxu0 0.0
        %1647 = vmatpush1.msra.mxu0 %v1543
        %1648 = vmatprep.subr.mxu0 0.0
        %1649 = vmatpush2.msra.mxu0 0.0
        %1650 = vmatprep.subr.mxu0 0.0
        %1651 = vmatpush2.msra.mxu0 0.0
        %1652 = vmatprep.subr.mxu0 0.0
        %1653 = vmatpush2.msra.mxu0 0.0
        %1654 = vmatprep.subr.mxu0 0.0
        %1655 = vmatpush2.msra.mxu0 0.0
        %1656 = vmatprep.subr.mxu0 0.0
        %1657 = vmatpush2.msra.mxu0 0.0
        %1658 = vmatprep.subr.mxu0 0.0
        %1659 = vmatpush2.msra.mxu0 0.0
        %1660 = vmatprep.subr.mxu0 0.0
        %1661 = vmatpush2.msra.mxu0 0.0
        %1662 = vmatprep.subr.mxu0 0.0
        %1663 = vmatpush2.msra.mxu0 0.0
        %1664 = vmatprep.subr.mxu0 0.0
        %1665 = vmatpush2.msra.mxu0 0.0
        %1666 = vmatprep.subr.mxu0 0.0
        %1667 = vmatpush2.msra.mxu0 0.0
        %1668 = vmatprep.subr.mxu0 0.0
        %1669 = vmatpush2.msra.mxu0 0.0
        %1670 = vmatprep.subr.mxu0 0.0
        %1671 = vmatpush2.msra.mxu0 0.0
        %1672 = vmatprep.subr.mxu0 0.0
        %1673 = vmatpush2.msra.mxu0 0.0
        %1674 = vmatprep.subr.mxu0 0.0
        %1675 = vmatpush2.msra.mxu0 0.0
        %1676 = vmatprep.subr.mxu0 0.0
        %1677 = vmatpush2.msra.mxu0 0.0
        %1678 = vmatprep.subr.mxu0 0.0
        %1679 = vmatpush2.msra.mxu0 0.0
        %1680 = vmatprep.mubr.f32.mxu0 0.0
        %1681 = vmatmul.mubr.f32.gmra.mxu0 %v1534
        %v1682 = vpop.f32.mrf.mxu0
        %v1683 = vadd.f32 0.0, %v1682
        %v1684 = vpop.f32.mrf.mxu0
        %1685 = vdwg.mxu0
        %v1686 = vadd.f32 %v1516, %v1612
        %v1687 = vadd.f32 %v1517, %v1614
        %v1688 = vadd.f32 %v1518, %v1683
        %v1689 = vld [vmem:[%s2] sm:$0xff]
        %1691 = vset.pattern.permute.xlu0 0
        %1692 = vperm.xlu0 %1691, %v1689
        %v1693 = vpop.permute.xlu0 %1692
        %v1695 = vadd.f32 %v1686, %v1693
        %v1696 = vadd.f32 %v1687, %v1693
        %v1697 = vadd.f32 %v1688, %v1693
        %1698 = vst [vmem:[%s163] sm:$0xff] %v1695
        %1699 = vst [vmem:[%s163 + $0x8] sm:$0xff] %v1696
        %1700 = vst [vmem:[%s163 + $0x10] sm:$0xff] %v1697
        %s1701 = sand.u32 %s93, 1
        %s1702 = scalar_lea.sflag [#allocation3], %s1701
        %s1703 = sand.u32 %s93, 1
        %s1704 = smul.addr %s1703, 24
        %s1705 = scalar_lea.vmem [#allocation2], %s1704
        // Predicated region
        $region33: #{tpu_custom_call.1} parent=31 // pred_check
          %p1706 = pneg %p103
        $region34: #{tpu_custom_call.1} parent=31 // pred_check_branch
          %1708 = sbr.rel (%p1706) target = $region36
        $region35: #{tpu_custom_call.1} parent=31 // pred_region
          %s1710 = ssub.s32 384, 384
          %1711 = vsyncadd %s1702, %s1710
          %s1712 = smul.addr %s17, 3
          %s1713 = smul.addr %s1712, 128
          %s1714 = scalar_lea.hbm %s3, %s1713
          %s1716 = sshll.u32 %s1705, 4
          %s1717 = int_to_ptr.vmem [resolvable:$true] %s1716
          %1719 = dma.vmem_to_hbm [thread:$0]  %s1717, 384, %s1714, %s1702
        $region36: #{tpu_custom_call.1} parent=31 // pred_fallthru
          _
      $region32: #{tpu_custom_call.1} parent=5 // pred_fallthru
        _
      %p1720 = scmp.le.s32.totalorder 2, %s12
      // Predicated region
      $region37: #{tpu_custom_call.1} parent=5 // pred_check
        %p1721 = pneg %p1720
      $region38: #{tpu_custom_call.1} parent=5 // pred_check_branch
        %1723 = sbr.rel (%p1721) target = $region40
      $region39: #{tpu_custom_call.1} parent=5 // pred_region
        %s1724 = ssub.s32 %s12, 2
        // Predicated region
        $region41: #{tpu_custom_call.1} parent=39 // pred_check
          %p1725 = pneg %p109
        $region42: #{tpu_custom_call.1} parent=39 // pred_check_branch
          %1727 = sbr.rel (%p1725) target = $region44
        $region43: #{tpu_custom_call.1} parent=39 // pred_region
          %s1728 = sand.u32 %s94, 1
          %s1729 = scalar_lea.sflag [#allocation3], %s1728
          %s1730 = sand.u32 %s94, 1
          %s1731 = smul.addr %s1730, 24
          %s1732 = scalar_lea.vmem [#allocation2], %s1731
          %1733 = dma.done %s1729, 384
        $region44: #{tpu_custom_call.1} parent=39 // pred_fallthru
          _
      $region40: #{tpu_custom_call.1} parent=5 // pred_fallthru
        _
    $region6: #{tpu_custom_call.1} parent=1 // loop_footer
      %s16 = sadd.s32 1, %s12
    $region7: #{tpu_custom_call.1} parent=1 // loop_footer_branch
      %11 = sbr.rel target = $region3
    $region8: #{tpu_custom_call.1} parent=1 // loop_exit
      _
    %1734 = vsyncpa [#allocation3], 1
    %s1735 = scalar_lea.sflag [#allocation3], 1
    %1736 = vsyncpa %s1735, 1

</llo_original>
